<compile_context>
chip_gen: v6e
topology: v6e:2x2x1
jax: 0.10.0
libtpu: 0.0.40
codegen_flags: <defaults>
</compile_context>

<pallas_src>
import functools

import numpy as np
import jax
import jax.numpy as jnp
from jax import lax
from jax.experimental import pallas as pl
from jax.experimental.pallas import tpu as pltpu


# ----------------------------------------------------------------------------
# Exact-form GELU built from guaranteed-lowerable ops (exp / abs / where).
# ----------------------------------------------------------------------------
def _erf_approx(x):
    # Abramowitz & Stegun 7.1.26 rational approximation, |err| < 1.5e-7.
    a1, a2, a3, a4, a5 = (0.254829592, -0.284496736, 1.421413741,
                          -1.453152027, 1.061405429)
    p = 0.3275911
    ax = jnp.abs(x)
    t = 1.0 / (1.0 + p * ax)
    poly = ((((a5 * t + a4) * t + a3) * t + a2) * t + a1) * t
    y = 1.0 - poly * jnp.exp(-ax * ax)
    return jnp.where(x < 0.0, -y, y)


def _gelu_exact(x):
    # Matches F.gelu default (erf form) to ~1e-6.
    return 0.5 * x * (1.0 + _erf_approx(x * 0.7071067811865476))


# ----------------------------------------------------------------------------
# Pallas kernel: whole problem in one step, lane-dense (channels, N*H*W) tiles.
# ----------------------------------------------------------------------------
def _ffn_kernel(x_ref, w_in_ref, b_in_ref, k_ref, mask_ref, b_dw_ref,
                w_out_ref, b_out_ref, o_ref, t2_ref, *, L, starts):
    # x_ref:     (C, L)      w_in_ref: (2h, C)    b_in_ref: (2h, 1)
    # k_ref:     (2h, 9)     mask_ref: (9, L)     b_dw_ref: (2h, 1)
    # w_out_ref: (C, h)      b_out_ref:(C, 1)     o_ref:    (C, L)
    # t2_ref:    (2h, 2L) VMEM scratch (project_in result staged twice).
    x = x_ref[...]

    # ---- project_in: 1x1 conv == channel matmul on the MXU ----
    t = jnp.dot(w_in_ref[...], x, preferred_element_type=jnp.float32)
    t = t + b_in_ref[...]                                    # (2h, L)

    # Stage t twice side-by-side so every depthwise tap becomes a static
    # window read (cyclic lane shift) with no concatenate / zero-pad copies.
    t2_ref[:, :L] = t
    t2_ref[:, L:] = t

    # ---- 3x3 depthwise conv, padding=1 ----
    # acc[c, l] += t[c, (l + dr*W + dc) mod L] * k[c, tap] * mask[tap, l]
    # (boundary + batch-edge masks and tap offsets precomputed in wrapper)
    acc = jnp.zeros_like(t)
    for tap in range(9):
        s = starts[tap]
        ktap = k_ref[:, tap:tap + 1]                         # (2h, 1)
        if s == 0:
            # Center tap: mask is all-ones, source already in registers.
            acc = acc + t * ktap
        else:
            src = t2_ref[:, s:s + L]                         # cyclic shift
            acc = acc + src * ktap * mask_ref[tap:tap + 1, :]
    acc = acc + b_dw_ref[...]                                # (2h, L)

    # ---- gated exact GELU ----
    hh = acc.shape[0] // 2
    g = _gelu_exact(acc[:hh, :]) * acc[hh:, :]               # (h, L)

    # ---- project_out: 1x1 conv == channel matmul on the MXU ----
    out = jnp.dot(w_out_ref[...], g, preferred_element_type=jnp.float32)
    o_ref[...] = out + b_out_ref[...]                        # (C, L)


def feedforward_pallas(x_nchw, w_in, b_in, w_dw, b_dw, w_out, b_out):
    """FeedForward forward pass.

    x_nchw: (N, C, H, W) float32
    w_in:   (2h, C)    folded project_in 1x1 weight
    b_in:   (2h,)
    w_dw:   (2h, 3, 3) folded depthwise 3x3 weight
    b_dw:   (2h,)
    w_out:  (C, h)     folded project_out 1x1 weight
    b_out:  (C,)
    Returns (N, C, H, W) float32.
    """
    N, C, H, W = x_nchw.shape
    h2 = w_in.shape[0]
    hidden = h2 // 2
    HW = H * W
    L = N * HW

    # ---- lane-dense operand layout (plain JAX, outside the kernel) ----
    x2d = jnp.transpose(x_nchw, (1, 0, 2, 3)).reshape(C, L)   # (C, N*H*W)
    k_taps = w_dw.reshape(h2, 9)                              # col = di*3 + dj

    # Per-tap boundary masks + static window offsets (lane -> (image row,col)).
    ii = (np.arange(L) % HW) // W      # image row of each lane
    jj = np.arange(L) % W              # image col of each lane
    masks, starts = [], []
    for di in range(3):
        for dj in range(3):
            dr, dc = di - 1, dj - 1
            ok = ((ii + dr >= 0) & (ii + dr < H) &
                  (jj + dc >= 0) & (jj + dc < W))
            masks.append(ok.astype(np.float32))
            starts.append(int((dr * W + dc) % L))
    mask_arr = jnp.asarray(np.stack(masks, axis=0))           # (9, L)

    kernel = functools.partial(_ffn_kernel, L=L, starts=tuple(starts))

    grid_spec = pltpu.PrefetchScalarGridSpec(
        num_scalar_prefetch=0,
        grid=(1,),                                            # one fat step
        in_specs=[
            pl.BlockSpec((C, L), lambda i: (0, 0)),           # x
            pl.BlockSpec((h2, C), lambda i: (0, 0)),          # w_in
            pl.BlockSpec((h2, 1), lambda i: (0, 0)),          # b_in
            pl.BlockSpec((h2, 9), lambda i: (0, 0)),          # dw taps
            pl.BlockSpec((9, L), lambda i: (0, 0)),           # tap masks
            pl.BlockSpec((h2, 1), lambda i: (0, 0)),          # b_dw
            pl.BlockSpec((C, hidden), lambda i: (0, 0)),      # w_out
            pl.BlockSpec((C, 1), lambda i: (0, 0)),           # b_out
        ],
        out_specs=pl.BlockSpec((C, L), lambda i: (0, 0)),
        scratch_shapes=[pltpu.VMEM((h2, 2 * L), jnp.float32)],
    )

    out2d = pl.pallas_call(
        kernel,
        out_shape=jax.ShapeDtypeStruct((C, L), jnp.float32),
        grid_spec=grid_spec,
        compiler_params=pltpu.CompilerParams(
            dimension_semantics=("arbitrary",),
            vmem_limit_bytes=32 * 1024 * 1024),
    )(x2d, w_in, b_in[:, None], k_taps, mask_arr, b_dw[:, None],
      w_out, b_out[:, None])

    return jnp.transpose(out2d.reshape(C, N, H, W), (1, 0, 2, 3))


# ----------------------------------------------------------------------------
# Parameter setup (plain JAX glue): weight-norm fold + layout conversion.
# ----------------------------------------------------------------------------
def fold_weight_norm(v, g):
    # v: (O, I, kH, kW), g: (O,). weight_norm default dim=0: per output channel.
    norm = jnp.sqrt(jnp.sum(v * v, axis=(1, 2, 3), keepdims=True))
    return g.reshape(-1, 1, 1, 1) * v / norm


def make_params(key, dim, ffn_expansion_factor):
    hidden = int(dim * ffn_expansion_factor)
    h2 = 2 * hidden
    ks = jax.random.split(key, 9)
    scale = 0.1

    v_in = scale * jax.random.normal(ks[0], (h2, dim, 1, 1), jnp.float32)
    g_in = jax.random.uniform(ks[1], (h2,), jnp.float32, 0.5, 1.5)
    b_in = scale * jax.random.normal(ks[2], (h2,), jnp.float32)

    v_dw = scale * jax.random.normal(ks[3], (h2, 1, 3, 3), jnp.float32)
    g_dw = jax.random.uniform(ks[4], (h2,), jnp.float32, 0.5, 1.5)
    b_dw = scale * jax.random.normal(ks[5], (h2,), jnp.float32)

    v_out = scale * jax.random.normal(ks[6], (dim, hidden, 1, 1), jnp.float32)
    g_out = jax.random.uniform(ks[7], (dim,), jnp.float32, 0.5, 1.5)
    b_out = scale * jax.random.normal(ks[8], (dim,), jnp.float32)

    # Folded OIHW weights (what PyTorch sees at forward time).
    w_in_oihw = fold_weight_norm(v_in, g_in)       # (2h, dim, 1, 1)
    w_dw_oihw = fold_weight_norm(v_dw, g_dw)       # (2h, 1, 3, 3)
    w_out_oihw = fold_weight_norm(v_out, g_out)    # (dim, h, 1, 1)

    return dict(
        # reference (NCHW / OIHW)
        w_in_oihw=w_in_oihw, w_dw_oihw=w_dw_oihw, w_out_oihw=w_out_oihw,
        b_in=b_in, b_dw=b_dw, b_out=b_out,
        # kernel layout
        w_in=w_in_oihw[:, :, 0, 0],                # (2h, dim)
        w_dw=w_dw_oihw[:, 0],                      # (2h, 3, 3)
        w_out=w_out_oihw[:, :, 0, 0],              # (dim, h)
    )


# ----------------------------------------------------------------------------
# Pure-JAX reference (NCHW, lax.conv) for a correctness check.
# ----------------------------------------------------------------------------
def ref_forward(x_nchw, p):
    dn = ("NCHW", "OIHW", "NCHW")
    h2 = p["w_in_oihw"].shape[0]
    h = h2 // 2
    t = lax.conv_general_dilated(x_nchw, p["w_in_oihw"], (1, 1), "VALID",
                                 dimension_numbers=dn)
    t = t + p["b_in"].reshape(1, -1, 1, 1)
    t = lax.conv_general_dilated(t, p["w_dw_oihw"], (1, 1), ((1, 1), (1, 1)),
                                 dimension_numbers=dn, feature_group_count=h2)
    t = t + p["b_dw"].reshape(1, -1, 1, 1)
    x1, x2 = t[:, :h], t[:, h:]
    g = jax.nn.gelu(x1, approximate=False) * x2
    out = lax.conv_general_dilated(g, p["w_out_oihw"], (1, 1), "VALID",
                                   dimension_numbers=dn)
    return out + p["b_out"].reshape(1, -1, 1, 1)


if __name__ == "__main__":
    key = jax.random.PRNGKey(0)
    kx, kp = jax.random.split(key)

    # FeedForward(dim=8, ffn_expansion_factor=2, bias=True)
    dim, ffn_factor = 8, 2
    N, H, W = 2, 16, 16

    x_nchw = jax.random.normal(kx, (N, dim, H, W), jnp.float32)
    params = make_params(kp, dim, ffn_factor)

    y = feedforward_pallas(x_nchw, params["w_in"], params["b_in"],
                           params["w_dw"], params["b_dw"],
                           params["w_out"], params["b_out"])
    y = jax.block_until_ready(y)

    # Verify against pure-JAX reference.
    y_ref = jax.block_until_ready(ref_forward(x_nchw, params))
    assert y.shape == (N, dim, H, W)
    max_err = float(jnp.max(jnp.abs(y - y_ref)))
    assert jnp.allclose(y, y_ref, rtol=1e-3, atol=1e-3), max_err

    print("KERNEL_OK")
</pallas_src>

<mosaic_0001>
module attributes {stable_mosaic.version = 11 : i64} {
  func.func @_ffn_kernel(%arg0: i32, %arg1: memref<8x512xf32, #tpu.memory_space<vmem>>, %arg2: memref<32x8xf32, #tpu.memory_space<vmem>>, %arg3: memref<32x1xf32, #tpu.memory_space<vmem>>, %arg4: memref<32x9xf32, #tpu.memory_space<vmem>>, %arg5: memref<9x512xf32, #tpu.memory_space<vmem>>, %arg6: memref<32x1xf32, #tpu.memory_space<vmem>>, %arg7: memref<8x16xf32, #tpu.memory_space<vmem>>, %arg8: memref<8x1xf32, #tpu.memory_space<vmem>>, %arg9: memref<8x512xf32, #tpu.memory_space<vmem>>, %arg10: memref<32x1024xf32, #tpu.memory_space<vmem>>) attributes {dimension_semantics = [#tpu.dimension_semantics<arbitrary>], iteration_bounds = array<i64: 1>, scalar_prefetch = 0 : i64, scratch_operands = 1 : i64, tpu.core_type = #tpu.core_type<tc>, window_params = [{pipeline_mode = #tpu.pipeline_mode<synchronous>, transform_indices = @transform_0, window_bounds = array<i64: 8, 512>}, {pipeline_mode = #tpu.pipeline_mode<synchronous>, transform_indices = @transform_1, window_bounds = array<i64: 32, 8>}, {pipeline_mode = #tpu.pipeline_mode<synchronous>, transform_indices = @transform_2, window_bounds = array<i64: 32, 1>}, {pipeline_mode = #tpu.pipeline_mode<synchronous>, transform_indices = @transform_3, window_bounds = array<i64: 32, 9>}, {pipeline_mode = #tpu.pipeline_mode<synchronous>, transform_indices = @transform_4, window_bounds = array<i64: 9, 512>}, {pipeline_mode = #tpu.pipeline_mode<synchronous>, transform_indices = @transform_5, window_bounds = array<i64: 32, 1>}, {pipeline_mode = #tpu.pipeline_mode<synchronous>, transform_indices = @transform_6, window_bounds = array<i64: 8, 16>}, {pipeline_mode = #tpu.pipeline_mode<synchronous>, transform_indices = @transform_7, window_bounds = array<i64: 8, 1>}, {pipeline_mode = #tpu.pipeline_mode<synchronous>, transform_indices = @transform_8, window_bounds = array<i64: 8, 512>}]} {
    %c0 = arith.constant 0 : index
    %c0_0 = arith.constant 0 : index
    %0 = vector.load %arg1[%c0, %c0_0] : memref<8x512xf32, #tpu.memory_space<vmem>>, vector<8x512xf32>
    %c0_1 = arith.constant 0 : index
    %c0_2 = arith.constant 0 : index
    %1 = vector.load %arg2[%c0_1, %c0_2] : memref<32x8xf32, #tpu.memory_space<vmem>>, vector<32x8xf32>
    %cst = arith.constant dense<0.000000e+00> : vector<32x512xf32>
    %2 = tpu.matmul %1, %0, %cst {dimension_numbers = #tpu.dot_dimension_numbers<[1], [0], [0], [1], [0, 0, 1, 1], [], []>} : vector<32x8xf32>, vector<8x512xf32>, vector<32x512xf32> -> vector<32x512xf32>
    %c0_3 = arith.constant 0 : index
    %c0_4 = arith.constant 0 : index
    %3 = vector.load %arg3[%c0_3, %c0_4] : memref<32x1xf32, #tpu.memory_space<vmem>>, vector<32x1xf32>
    %4 = vector.broadcast %3 : vector<32x1xf32> to vector<32x512xf32>
    %5 = arith.addf %2, %4 : vector<32x512xf32>
    %c0_5 = arith.constant 0 : index
    %c0_6 = arith.constant 0 : index
    %6 = vector.load %arg10[%c0_5, %c0_6] : memref<32x1024xf32, #tpu.memory_space<vmem>>, vector<32x512xf32>
    tpu.vector_store %arg10[%c0_5, %c0_6], %5 {strides = array<i32>} : memref<32x1024xf32, #tpu.memory_space<vmem>>, vector<32x512xf32>,
    %c0_7 = arith.constant 0 : index
    %c512 = arith.constant 512 : index
    %7 = vector.load %arg10[%c0_7, %c512] : memref<32x1024xf32, #tpu.memory_space<vmem>>, vector<32x512xf32>
    tpu.vector_store %arg10[%c0_7, %c512], %5 {strides = array<i32>} : memref<32x1024xf32, #tpu.memory_space<vmem>>, vector<32x512xf32>,
    %cst_8 = arith.constant 0.000000e+00 : f32
    %8 = vector.broadcast %cst_8 : f32 to vector<32x512xf32>
    %c0_9 = arith.constant 0 : index
    %c0_10 = arith.constant 0 : index
    %9 = vector.load %arg4[%c0_9, %c0_10] : memref<32x9xf32, #tpu.memory_space<vmem>>, vector<32x1xf32>
    %c0_11 = arith.constant 0 : index
    %c495 = arith.constant 495 : index
    %10 = vector.load %arg10[%c0_11, %c495] : memref<32x1024xf32, #tpu.memory_space<vmem>>, vector<32x512xf32>
    %11 = vector.broadcast %9 : vector<32x1xf32> to vector<32x512xf32>
    %12 = arith.mulf %10, %11 : vector<32x512xf32>
    %c0_12 = arith.constant 0 : index
    %c0_13 = arith.constant 0 : index
    %13 = vector.load %arg5[%c0_12, %c0_13] : memref<9x512xf32, #tpu.memory_space<vmem>>, vector<1x512xf32>
    %14 = vector.broadcast %13 : vector<1x512xf32> to vector<32x512xf32>
    %15 = arith.mulf %12, %14 : vector<32x512xf32>
    %16 = arith.addf %8, %15 : vector<32x512xf32>
    %c0_14 = arith.constant 0 : index
    %c1 = arith.constant 1 : index
    %17 = vector.load %arg4[%c0_14, %c1] : memref<32x9xf32, #tpu.memory_space<vmem>>, vector<32x1xf32>
    %c0_15 = arith.constant 0 : index
    %c496 = arith.constant 496 : index
    %18 = vector.load %arg10[%c0_15, %c496] : memref<32x1024xf32, #tpu.memory_space<vmem>>, vector<32x512xf32>
    %19 = vector.broadcast %17 : vector<32x1xf32> to vector<32x512xf32>
    %20 = arith.mulf %18, %19 : vector<32x512xf32>
    %c1_16 = arith.constant 1 : index
    %c0_17 = arith.constant 0 : index
    %21 = vector.load %arg5[%c1_16, %c0_17] : memref<9x512xf32, #tpu.memory_space<vmem>>, vector<1x512xf32>
    %22 = vector.broadcast %21 : vector<1x512xf32> to vector<32x512xf32>
    %23 = arith.mulf %20, %22 : vector<32x512xf32>
    %24 = arith.addf %16, %23 : vector<32x512xf32>
    %c0_18 = arith.constant 0 : index
    %c2 = arith.constant 2 : index
    %25 = vector.load %arg4[%c0_18, %c2] : memref<32x9xf32, #tpu.memory_space<vmem>>, vector<32x1xf32>
    %c0_19 = arith.constant 0 : index
    %c497 = arith.constant 497 : index
    %26 = vector.load %arg10[%c0_19, %c497] : memref<32x1024xf32, #tpu.memory_space<vmem>>, vector<32x512xf32>
    %27 = vector.broadcast %25 : vector<32x1xf32> to vector<32x512xf32>
    %28 = arith.mulf %26, %27 : vector<32x512xf32>
    %c2_20 = arith.constant 2 : index
    %c0_21 = arith.constant 0 : index
    %29 = vector.load %arg5[%c2_20, %c0_21] : memref<9x512xf32, #tpu.memory_space<vmem>>, vector<1x512xf32>
    %30 = vector.broadcast %29 : vector<1x512xf32> to vector<32x512xf32>
    %31 = arith.mulf %28, %30 : vector<32x512xf32>
    %32 = arith.addf %24, %31 : vector<32x512xf32>
    %c0_22 = arith.constant 0 : index
    %c3 = arith.constant 3 : index
    %33 = vector.load %arg4[%c0_22, %c3] : memref<32x9xf32, #tpu.memory_space<vmem>>, vector<32x1xf32>
    %c0_23 = arith.constant 0 : index
    %c511 = arith.constant 511 : index
    %34 = vector.load %arg10[%c0_23, %c511] : memref<32x1024xf32, #tpu.memory_space<vmem>>, vector<32x512xf32>
    %35 = vector.broadcast %33 : vector<32x1xf32> to vector<32x512xf32>
    %36 = arith.mulf %34, %35 : vector<32x512xf32>
    %c3_24 = arith.constant 3 : index
    %c0_25 = arith.constant 0 : index
    %37 = vector.load %arg5[%c3_24, %c0_25] : memref<9x512xf32, #tpu.memory_space<vmem>>, vector<1x512xf32>
    %38 = vector.broadcast %37 : vector<1x512xf32> to vector<32x512xf32>
    %39 = arith.mulf %36, %38 : vector<32x512xf32>
    %40 = arith.addf %32, %39 : vector<32x512xf32>
    %c0_26 = arith.constant 0 : index
    %c4 = arith.constant 4 : index
    %41 = vector.load %arg4[%c0_26, %c4] : memref<32x9xf32, #tpu.memory_space<vmem>>, vector<32x1xf32>
    %42 = vector.broadcast %41 : vector<32x1xf32> to vector<32x512xf32>
    %43 = arith.mulf %5, %42 : vector<32x512xf32>
    %44 = arith.addf %40, %43 : vector<32x512xf32>
    %c0_27 = arith.constant 0 : index
    %c5 = arith.constant 5 : index
    %45 = vector.load %arg4[%c0_27, %c5] : memref<32x9xf32, #tpu.memory_space<vmem>>, vector<32x1xf32>
    %c0_28 = arith.constant 0 : index
    %c1_29 = arith.constant 1 : index
    %46 = vector.load %arg10[%c0_28, %c1_29] : memref<32x1024xf32, #tpu.memory_space<vmem>>, vector<32x512xf32>
    %47 = vector.broadcast %45 : vector<32x1xf32> to vector<32x512xf32>
    %48 = arith.mulf %46, %47 : vector<32x512xf32>
    %c5_30 = arith.constant 5 : index
    %c0_31 = arith.constant 0 : index
    %49 = vector.load %arg5[%c5_30, %c0_31] : memref<9x512xf32, #tpu.memory_space<vmem>>, vector<1x512xf32>
    %50 = vector.broadcast %49 : vector<1x512xf32> to vector<32x512xf32>
    %51 = arith.mulf %48, %50 : vector<32x512xf32>
    %52 = arith.addf %44, %51 : vector<32x512xf32>
    %c0_32 = arith.constant 0 : index
    %c6 = arith.constant 6 : index
    %53 = vector.load %arg4[%c0_32, %c6] : memref<32x9xf32, #tpu.memory_space<vmem>>, vector<32x1xf32>
    %c0_33 = arith.constant 0 : index
    %c15 = arith.constant 15 : index
    %54 = vector.load %arg10[%c0_33, %c15] : memref<32x1024xf32, #tpu.memory_space<vmem>>, vector<32x512xf32>
    %55 = vector.broadcast %53 : vector<32x1xf32> to vector<32x512xf32>
    %56 = arith.mulf %54, %55 : vector<32x512xf32>
    %c6_34 = arith.constant 6 : index
    %c0_35 = arith.constant 0 : index
    %57 = vector.load %arg5[%c6_34, %c0_35] : memref<9x512xf32, #tpu.memory_space<vmem>>, vector<1x512xf32>
    %58 = vector.broadcast %57 : vector<1x512xf32> to vector<32x512xf32>
    %59 = arith.mulf %56, %58 : vector<32x512xf32>
    %60 = arith.addf %52, %59 : vector<32x512xf32>
    %c0_36 = arith.constant 0 : index
    %c7 = arith.constant 7 : index
    %61 = vector.load %arg4[%c0_36, %c7] : memref<32x9xf32, #tpu.memory_space<vmem>>, vector<32x1xf32>
    %c0_37 = arith.constant 0 : index
    %c16 = arith.constant 16 : index
    %62 = vector.load %arg10[%c0_37, %c16] : memref<32x1024xf32, #tpu.memory_space<vmem>>, vector<32x512xf32>
    %63 = vector.broadcast %61 : vector<32x1xf32> to vector<32x512xf32>
    %64 = arith.mulf %62, %63 : vector<32x512xf32>
    %c7_38 = arith.constant 7 : index
    %c0_39 = arith.constant 0 : index
    %65 = vector.load %arg5[%c7_38, %c0_39] : memref<9x512xf32, #tpu.memory_space<vmem>>, vector<1x512xf32>
    %66 = vector.broadcast %65 : vector<1x512xf32> to vector<32x512xf32>
    %67 = arith.mulf %64, %66 : vector<32x512xf32>
    %68 = arith.addf %60, %67 : vector<32x512xf32>
    %c0_40 = arith.constant 0 : index
    %c8 = arith.constant 8 : index
    %69 = vector.load %arg4[%c0_40, %c8] : memref<32x9xf32, #tpu.memory_space<vmem>>, vector<32x1xf32>
    %c0_41 = arith.constant 0 : index
    %c17 = arith.constant 17 : index
    %70 = vector.load %arg10[%c0_41, %c17] : memref<32x1024xf32, #tpu.memory_space<vmem>>, vector<32x512xf32>
    %71 = vector.broadcast %69 : vector<32x1xf32> to vector<32x512xf32>
    %72 = arith.mulf %70, %71 : vector<32x512xf32>
    %c8_42 = arith.constant 8 : index
    %c0_43 = arith.constant 0 : index
    %73 = vector.load %arg5[%c8_42, %c0_43] : memref<9x512xf32, #tpu.memory_space<vmem>>, vector<1x512xf32>
    %74 = vector.broadcast %73 : vector<1x512xf32> to vector<32x512xf32>
    %75 = arith.mulf %72, %74 : vector<32x512xf32>
    %76 = arith.addf %68, %75 : vector<32x512xf32>
    %c0_44 = arith.constant 0 : index
    %c0_45 = arith.constant 0 : index
    %77 = vector.load %arg6[%c0_44, %c0_45] : memref<32x1xf32, #tpu.memory_space<vmem>>, vector<32x1xf32>
    %78 = vector.broadcast %77 : vector<32x1xf32> to vector<32x512xf32>
    %79 = arith.addf %76, %78 : vector<32x512xf32>
    %80 = vector.extract_strided_slice %79 {offsets = [0, 0], sizes = [16, 512], strides = [1, 1]} : vector<32x512xf32> to vector<16x512xf32>
    %cst_46 = arith.constant 5.000000e-01 : f32
    %81 = vector.broadcast %cst_46 : f32 to vector<16x512xf32>
    %82 = arith.mulf %81, %80 : vector<16x512xf32>
    %cst_47 = arith.constant 0.707106769 : f32
    %83 = vector.broadcast %cst_47 : f32 to vector<16x512xf32>
    %84 = arith.mulf %80, %83 : vector<16x512xf32>
    %85 = math.absf %84 : vector<16x512xf32>
    %cst_48 = arith.constant 0.327591091 : f32
    %86 = vector.broadcast %cst_48 : f32 to vector<16x512xf32>
    %87 = arith.mulf %86, %85 : vector<16x512xf32>
    %cst_49 = arith.constant 1.000000e+00 : f32
    %88 = vector.broadcast %cst_49 : f32 to vector<16x512xf32>
    %89 = arith.addf %88, %87 : vector<16x512xf32>
    %cst_50 = arith.constant 1.000000e+00 : f32
    %90 = vector.broadcast %cst_50 : f32 to vector<16x512xf32>
    %91 = arith.divf %90, %89 : vector<16x512xf32>
    %cst_51 = arith.constant 1.06140542 : f32
    %92 = vector.broadcast %cst_51 : f32 to vector<16x512xf32>
    %93 = arith.mulf %92, %91 : vector<16x512xf32>
    %cst_52 = arith.constant -1.45315206 : f32
    %94 = vector.broadcast %cst_52 : f32 to vector<16x512xf32>
    %95 = arith.addf %93, %94 : vector<16x512xf32>
    %96 = arith.mulf %95, %91 : vector<16x512xf32>
    %cst_53 = arith.constant 1.42141378 : f32
    %97 = vector.broadcast %cst_53 : f32 to vector<16x512xf32>
    %98 = arith.addf %96, %97 : vector<16x512xf32>
    %99 = arith.mulf %98, %91 : vector<16x512xf32>
    %cst_54 = arith.constant -0.284496725 : f32
    %100 = vector.broadcast %cst_54 : f32 to vector<16x512xf32>
    %101 = arith.addf %99, %100 : vector<16x512xf32>
    %102 = arith.mulf %101, %91 : vector<16x512xf32>
    %cst_55 = arith.constant 0.254829586 : f32
    %103 = vector.broadcast %cst_55 : f32 to vector<16x512xf32>
    %104 = arith.addf %102, %103 : vector<16x512xf32>
    %105 = arith.mulf %104, %91 : vector<16x512xf32>
    %cst_56 = arith.constant 0.000000e+00 : f32
    %106 = vector.broadcast %cst_56 : f32 to vector<16x512xf32>
    %107 = arith.subf %106, %85 : vector<16x512xf32>
    %108 = arith.mulf %107, %85 : vector<16x512xf32>
    %109 = math.exp %108 : vector<16x512xf32>
    %110 = arith.mulf %105, %109 : vector<16x512xf32>
    %cst_57 = arith.constant 1.000000e+00 : f32
    %111 = vector.broadcast %cst_57 : f32 to vector<16x512xf32>
    %112 = arith.subf %111, %110 : vector<16x512xf32>
    %cst_58 = arith.constant 0.000000e+00 : f32
    %113 = vector.broadcast %cst_58 : f32 to vector<16x512xf32>
    %114 = arith.cmpf olt, %84, %113 : vector<16x512xf32>
    %cst_59 = arith.constant 0.000000e+00 : f32
    %115 = vector.broadcast %cst_59 : f32 to vector<16x512xf32>
    %116 = arith.subf %115, %112 : vector<16x512xf32>
    %117 = arith.select %114, %116, %112 : vector<16x512xi1>, vector<16x512xf32>
    %cst_60 = arith.constant 1.000000e+00 : f32
    %118 = vector.broadcast %cst_60 : f32 to vector<16x512xf32>
    %119 = arith.addf %118, %117 : vector<16x512xf32>
    %120 = arith.mulf %82, %119 : vector<16x512xf32>
    %121 = vector.extract_strided_slice %79 {offsets = [16, 0], sizes = [16, 512], strides = [1, 1]} : vector<32x512xf32> to vector<16x512xf32>
    %122 = arith.mulf %120, %121 : vector<16x512xf32>
    %c0_61 = arith.constant 0 : index
    %c0_62 = arith.constant 0 : index
    %123 = vector.load %arg7[%c0_61, %c0_62] : memref<8x16xf32, #tpu.memory_space<vmem>>, vector<8x16xf32>
    %cst_63 = arith.constant dense<0.000000e+00> : vector<8x512xf32>
    %124 = tpu.matmul %123, %122, %cst_63 {dimension_numbers = #tpu.dot_dimension_numbers<[1], [0], [0], [1], [0, 0, 1, 1], [], []>} : vector<8x16xf32>, vector<16x512xf32>, vector<8x512xf32> -> vector<8x512xf32>
    %c0_64 = arith.constant 0 : index
    %c0_65 = arith.constant 0 : index
    %125 = vector.load %arg8[%c0_64, %c0_65] : memref<8x1xf32, #tpu.memory_space<vmem>>, vector<8x1xf32>
    %126 = vector.broadcast %125 : vector<8x1xf32> to vector<8x512xf32>
    %127 = arith.addf %124, %126 : vector<8x512xf32>
    %c0_66 = arith.constant 0 : index
    %c0_67 = arith.constant 0 : index
    %128 = vector.load %arg9[%c0_66, %c0_67] : memref<8x512xf32, #tpu.memory_space<vmem>>, vector<8x512xf32>
    tpu.vector_store %arg9[%c0_66, %c0_67], %127 {strides = array<i32>} : memref<8x512xf32, #tpu.memory_space<vmem>>, vector<8x512xf32>,
    return
  }
  func.func @transform_0(%arg0: i32) -> (i32, i32) {
    %c0_i32 = arith.constant 0 : i32
    %c0_i32_0 = arith.constant 0 : i32
    %c0_i32_1 = arith.constant 0 : i32
    return %c0_i32, %c0_i32_0 : i32, i32
  }
  func.func @transform_1(%arg0: i32) -> (i32, i32) {
    %c0_i32 = arith.constant 0 : i32
    %c0_i32_0 = arith.constant 0 : i32
    %c0_i32_1 = arith.constant 0 : i32
    return %c0_i32, %c0_i32_0 : i32, i32
  }
  func.func @transform_2(%arg0: i32) -> (i32, i32) {
    %c0_i32 = arith.constant 0 : i32
    %c0_i32_0 = arith.constant 0 : i32
    %c0_i32_1 = arith.constant 0 : i32
    return %c0_i32, %c0_i32_0 : i32, i32
  }
  func.func @transform_3(%arg0: i32) -> (i32, i32) {
    %c0_i32 = arith.constant 0 : i32
    %c0_i32_0 = arith.constant 0 : i32
    %c0_i32_1 = arith.constant 0 : i32
    return %c0_i32, %c0_i32_0 : i32, i32
  }
  func.func @transform_4(%arg0: i32) -> (i32, i32) {
    %c0_i32 = arith.constant 0 : i32
    %c0_i32_0 = arith.constant 0 : i32
    %c0_i32_1 = arith.constant 0 : i32
    return %c0_i32, %c0_i32_0 : i32, i32
  }
  func.func @transform_5(%arg0: i32) -> (i32, i32) {
    %c0_i32 = arith.constant 0 : i32
    %c0_i32_0 = arith.constant 0 : i32
    %c0_i32_1 = arith.constant 0 : i32
    return %c0_i32, %c0_i32_0 : i32, i32
  }
  func.func @transform_6(%arg0: i32) -> (i32, i32) {
    %c0_i32 = arith.constant 0 : i32
    %c0_i32_0 = arith.constant 0 : i32
    %c0_i32_1 = arith.constant 0 : i32
    return %c0_i32, %c0_i32_0 : i32, i32
  }
  func.func @transform_7(%arg0: i32) -> (i32, i32) {
    %c0_i32 = arith.constant 0 : i32
    %c0_i32_0 = arith.constant 0 : i32
    %c0_i32_1 = arith.constant 0 : i32
    return %c0_i32, %c0_i32_0 : i32, i32
  }
  func.func @transform_8(%arg0: i32) -> (i32, i32) {
    %c0_i32 = arith.constant 0 : i32
    %c0_i32_0 = arith.constant 0 : i32
    %c0_i32_1 = arith.constant 0 : i32
    return %c0_i32, %c0_i32_0 : i32, i32
  }
}

</mosaic_0001>

<llo_original>
// kernel: tpu_custom_call.1
$region0: #{tpu_custom_call.1}
  #allocation0 [shape = 'u32[]', space=smem, size = 0x4, offset = 0x4, fixed_abs, tag = 'smem constant byte address 0x4 - core index']
  #allocation1 [shape = 'u32[144,128]{1,0:T(1,128)}', space=vmem, size = 0x12000, scoped, tag = 'internal scratch']
  #allocation2 [shape = 'f32[32,1024]{1,0:T(8,128)}', space=vmem, size = 0x20000, scoped, tag = 'scratch operand']
  %s0 = inlined_call_operand.vmem [shape: f32[8,512], index: 0, kind: input, shape index: {}]
  %s1 = inlined_call_operand.vmem [shape: f32[32,8], index: 1, kind: input, shape index: {}]
  %s2 = inlined_call_operand.vmem [shape: f32[32,1], index: 2, kind: input, shape index: {}]
  %s3 = inlined_call_operand.vmem [shape: f32[32,9], index: 3, kind: input, shape index: {}]
  %s4 = inlined_call_operand.vmem [shape: f32[9,512], index: 4, kind: input, shape index: {}]
  %s5 = inlined_call_operand.vmem [shape: f32[32,1], index: 5, kind: input, shape index: {}]
  %s6 = inlined_call_operand.vmem [shape: f32[8,16], index: 6, kind: input, shape index: {}]
  %s7 = inlined_call_operand.vmem [shape: f32[8,1], index: 7, kind: input, shape index: {}]
  %s8 = inlined_call_operand.hbm [shape: f32[8,512], index: 8, kind: output, shape index: {}]
  %s9 = sld [smem:[#allocation0]]
  $region42: #{tpu_custom_call.1} parent=0
    _
  %s11 = ssub.s32 1, %s9
  %s12 = scalar_select 0, %s11, %s9
  $region1: #{tpu_custom_call.1} parent=0
    #allocation3 [shape = 'u8[16384]{0}', space=vmem, size = 0x4000, scoped, tag = 'output window, operand 0, single buffered']
    #allocation4 [shape = 's32[1]{0}', space=sflag, size = 0x4, scoped, tag = 'scoped memory for tpu_custom_call.1']
    %13 = vsyncpa [#allocation4], 0
    // Predicated region
    $region2: #{tpu_custom_call.1} parent=1 // pred_check
      _
    $region3: #{tpu_custom_call.1} parent=1 // pred_check_branch
      %15 = sbr.rel (0) target = $region5
    $region4: #{tpu_custom_call.1} parent=1 // pred_region
      _
    $region5: #{tpu_custom_call.1} parent=1 // pred_fallthru
      _
    // Predicated region
    $region6: #{tpu_custom_call.1} parent=1 // pred_check
      _
    $region7: #{tpu_custom_call.1} parent=1 // pred_check_branch
      %17 = sbr.rel (0) target = $region9
    $region8: #{tpu_custom_call.1} parent=1 // pred_region
      _
    $region9: #{tpu_custom_call.1} parent=1 // pred_fallthru
      _
    // Predicated region
    $region10: #{tpu_custom_call.1} parent=1 // pred_check
      _
    $region11: #{tpu_custom_call.1} parent=1 // pred_check_branch
      %19 = sbr.rel (0) target = $region13
    $region12: #{tpu_custom_call.1} parent=1 // pred_region
      _
    $region13: #{tpu_custom_call.1} parent=1 // pred_fallthru
      _
    // Predicated region
    $region14: #{tpu_custom_call.1} parent=1 // pred_check
      _
    $region15: #{tpu_custom_call.1} parent=1 // pred_check_branch
      %21 = sbr.rel (0) target = $region17
    $region16: #{tpu_custom_call.1} parent=1 // pred_region
      _
    $region17: #{tpu_custom_call.1} parent=1 // pred_fallthru
      _
    // Predicated region
    $region18: #{tpu_custom_call.1} parent=1 // pred_check
      _
    $region19: #{tpu_custom_call.1} parent=1 // pred_check_branch
      %23 = sbr.rel (0) target = $region21
    $region20: #{tpu_custom_call.1} parent=1 // pred_region
      _
    $region21: #{tpu_custom_call.1} parent=1 // pred_fallthru
      _
    // Predicated region
    $region22: #{tpu_custom_call.1} parent=1 // pred_check
      _
    $region23: #{tpu_custom_call.1} parent=1 // pred_check_branch
      %25 = sbr.rel (0) target = $region25
    $region24: #{tpu_custom_call.1} parent=1 // pred_region
      _
    $region25: #{tpu_custom_call.1} parent=1 // pred_fallthru
      _
    // Predicated region
    $region26: #{tpu_custom_call.1} parent=1 // pred_check
      _
    $region27: #{tpu_custom_call.1} parent=1 // pred_check_branch
      %27 = sbr.rel (0) target = $region29
    $region28: #{tpu_custom_call.1} parent=1 // pred_region
      _
    $region29: #{tpu_custom_call.1} parent=1 // pred_fallthru
      _
    // Predicated region
    $region30: #{tpu_custom_call.1} parent=1 // pred_check
      _
    $region31: #{tpu_custom_call.1} parent=1 // pred_check_branch
      %29 = sbr.rel (0) target = $region33
    $region32: #{tpu_custom_call.1} parent=1 // pred_region
      _
    $region33: #{tpu_custom_call.1} parent=1 // pred_fallthru
      _
    %v30 = vld [vmem:[%s0] sm:$0xff]
    %v31 = vld [vmem:[%s0 + $0x8] sm:$0xff]
    %v32 = vld [vmem:[%s0 + $0x10] sm:$0xff]
    %v33 = vld [vmem:[%s0 + $0x18] sm:$0xff]
    %v34 = vld [vmem:[%s1] sm:$0xff]
    %v35 = vld [vmem:[%s1 + $0x8] sm:$0xff]
    %v36 = vld [vmem:[%s1 + $0x10] sm:$0xff]
    %v37 = vld [vmem:[%s1 + $0x18] sm:$0xff]
    %v38 = vld [vmem:[%s2] sm:$0xff]
    %v39 = vld [vmem:[%s2 + $0x8] sm:$0xff]
    %v40 = vld [vmem:[%s2 + $0x10] sm:$0xff]
    %v41 = vld [vmem:[%s2 + $0x18] sm:$0xff]
    %43 = vset.pattern.permute.xlu0 0
    %44 = vperm.xlu0 %43, %v38
    %v45 = vpop.permute.xlu0 %44
    %48 = vset.pattern.permute.xlu0 0
    %49 = vperm.xlu0 %48, %v39
    %v50 = vpop.permute.xlu0 %49
    %53 = vset.pattern.permute.xlu0 0
    %54 = vperm.xlu0 %53, %v40
    %v55 = vpop.permute.xlu0 %54
    %58 = vset.pattern.permute.xlu0 0
    %59 = vperm.xlu0 %58, %v41
    %v60 = vpop.permute.xlu0 %59
    %vm62 = vcmask 64512
    %v64 = vsel %vm62, %v34, 0
    %v67 = vsel %vm62, %v35, 0
    %v70 = vsel %vm62, %v36, 0
    %v73 = vsel %vm62, %v37, 0
    %75 = vmatprep.subr.mxu0 0.0
    %76 = vmatpush1.msra.mxu0 0.0
    %77 = vmatprep.subr.mxu0 0.0
    %78 = vmatpush1.msra.mxu0 0.0
    %79 = vmatprep.subr.mxu0 0.0
    %80 = vmatpush1.msra.mxu0 0.0
    %81 = vmatprep.subr.mxu0 0.0
    %82 = vmatpush1.msra.mxu0 0.0
    %83 = vmatprep.subr.mxu0 0.0
    %84 = vmatpush1.msra.mxu0 0.0
    %85 = vmatprep.subr.mxu0 0.0
    %86 = vmatpush1.msra.mxu0 0.0
    %87 = vmatprep.subr.mxu0 0.0
    %88 = vmatpush1.msra.mxu0 0.0
    %89 = vmatprep.subr.mxu0 0.0
    %90 = vmatpush1.msra.mxu0 0.0
    %91 = vmatprep.subr.mxu0 0.0
    %92 = vmatpush1.msra.mxu0 0.0
    %93 = vmatprep.subr.mxu0 0.0
    %94 = vmatpush1.msra.mxu0 0.0
    %95 = vmatprep.subr.mxu0 0.0
    %96 = vmatpush1.msra.mxu0 0.0
    %97 = vmatprep.subr.mxu0 0.0
    %98 = vmatpush1.msra.mxu0 0.0
    %99 = vmatprep.subr.mxu0 0.0
    %100 = vmatpush1.msra.mxu0 0.0
    %101 = vmatprep.subr.mxu0 0.0
    %102 = vmatpush1.msra.mxu0 0.0
    %103 = vmatprep.subr.mxu0 0.0
    %104 = vmatpush1.msra.mxu0 0.0
    %105 = vmatprep.subr.mxu0 %v31
    %106 = vmatpush1.msra.mxu0 %v30
    %107 = vmatprep.subr.mxu0 0.0
    %108 = vmatpush2.msra.mxu0 0.0
    %109 = vmatprep.subr.mxu0 0.0
    %110 = vmatpush2.msra.mxu0 0.0
    %111 = vmatprep.subr.mxu0 0.0
    %112 = vmatpush2.msra.mxu0 0.0
    %113 = vmatprep.subr.mxu0 0.0
    %114 = vmatpush2.msra.mxu0 0.0
    %115 = vmatprep.subr.mxu0 0.0
    %116 = vmatpush2.msra.mxu0 0.0
    %117 = vmatprep.subr.mxu0 0.0
    %118 = vmatpush2.msra.mxu0 0.0
    %119 = vmatprep.subr.mxu0 0.0
    %120 = vmatpush2.msra.mxu0 0.0
    %121 = vmatprep.subr.mxu0 0.0
    %122 = vmatpush2.msra.mxu0 0.0
    %123 = vmatprep.subr.mxu0 0.0
    %124 = vmatpush2.msra.mxu0 0.0
    %125 = vmatprep.subr.mxu0 0.0
    %126 = vmatpush2.msra.mxu0 0.0
    %127 = vmatprep.subr.mxu0 0.0
    %128 = vmatpush2.msra.mxu0 0.0
    %129 = vmatprep.subr.mxu0 0.0
    %130 = vmatpush2.msra.mxu0 0.0
    %131 = vmatprep.subr.mxu0 0.0
    %132 = vmatpush2.msra.mxu0 0.0
    %133 = vmatprep.subr.mxu0 0.0
    %134 = vmatpush2.msra.mxu0 0.0
    %135 = vmatprep.subr.mxu0 0.0
    %136 = vmatpush2.msra.mxu0 0.0
    %137 = vmatprep.subr.mxu0 0.0
    %138 = vmatpush2.msra.mxu0 0.0
    %139 = vmatprep.mubr.f32.mxu0 0.0
    %140 = vmatmul.mubr.f32.gmra.mxu0 %v64
    %v141 = vpop.f32.mrf.mxu0
    %v142 = vadd.f32 %v45, %v141
    %v143 = vpop.f32.mrf.mxu0
    %v144 = vadd.f32 %v45, %v143
    %145 = vmatprep.mubr.f32.mxu0 0.0
    %146 = vmatmul.mubr.f32.gmra.mxu0 %v67
    %v147 = vpop.f32.mrf.mxu0
    %v148 = vadd.f32 %v50, %v147
    %v149 = vpop.f32.mrf.mxu0
    %v150 = vadd.f32 %v50, %v149
    %151 = vmatprep.mubr.f32.mxu0 0.0
    %152 = vmatmul.mubr.f32.gmra.mxu0 %v70
    %v153 = vpop.f32.mrf.mxu0
    %v154 = vadd.f32 %v55, %v153
    %v155 = vpop.f32.mrf.mxu0
    %v156 = vadd.f32 %v55, %v155
    %157 = vmatprep.mubr.f32.mxu0 0.0
    %158 = vmatmul.mubr.f32.gmra.mxu0 %v73
    %v159 = vpop.f32.mrf.mxu0
    %v160 = vadd.f32 %v60, %v159
    %v161 = vpop.f32.mrf.mxu0
    %v162 = vadd.f32 %v60, %v161
    %163 = vdwg.mxu0
    %164 = vmatprep.subr.mxu0 0.0
    %165 = vmatpush1.msra.mxu0 0.0
    %166 = vmatprep.subr.mxu0 0.0
    %167 = vmatpush1.msra.mxu0 0.0
    %168 = vmatprep.subr.mxu0 0.0
    %169 = vmatpush1.msra.mxu0 0.0
    %170 = vmatprep.subr.mxu0 0.0
    %171 = vmatpush1.msra.mxu0 0.0
    %172 = vmatprep.subr.mxu0 0.0
    %173 = vmatpush1.msra.mxu0 0.0
    %174 = vmatprep.subr.mxu0 0.0
    %175 = vmatpush1.msra.mxu0 0.0
    %176 = vmatprep.subr.mxu0 0.0
    %177 = vmatpush1.msra.mxu0 0.0
    %178 = vmatprep.subr.mxu0 0.0
    %179 = vmatpush1.msra.mxu0 0.0
    %180 = vmatprep.subr.mxu0 0.0
    %181 = vmatpush1.msra.mxu0 0.0
    %182 = vmatprep.subr.mxu0 0.0
    %183 = vmatpush1.msra.mxu0 0.0
    %184 = vmatprep.subr.mxu0 0.0
    %185 = vmatpush1.msra.mxu0 0.0
    %186 = vmatprep.subr.mxu0 0.0
    %187 = vmatpush1.msra.mxu0 0.0
    %188 = vmatprep.subr.mxu0 0.0
    %189 = vmatpush1.msra.mxu0 0.0
    %190 = vmatprep.subr.mxu0 0.0
    %191 = vmatpush1.msra.mxu0 0.0
    %192 = vmatprep.subr.mxu0 0.0
    %193 = vmatpush1.msra.mxu0 0.0
    %194 = vmatprep.subr.mxu0 %v33
    %195 = vmatpush1.msra.mxu0 %v32
    %196 = vmatprep.subr.mxu0 0.0
    %197 = vmatpush2.msra.mxu0 0.0
    %198 = vmatprep.subr.mxu0 0.0
    %199 = vmatpush2.msra.mxu0 0.0
    %200 = vmatprep.subr.mxu0 0.0
    %201 = vmatpush2.msra.mxu0 0.0
    %202 = vmatprep.subr.mxu0 0.0
    %203 = vmatpush2.msra.mxu0 0.0
    %204 = vmatprep.subr.mxu0 0.0
    %205 = vmatpush2.msra.mxu0 0.0
    %206 = vmatprep.subr.mxu0 0.0
    %207 = vmatpush2.msra.mxu0 0.0
    %208 = vmatprep.subr.mxu0 0.0
    %209 = vmatpush2.msra.mxu0 0.0
    %210 = vmatprep.subr.mxu0 0.0
    %211 = vmatpush2.msra.mxu0 0.0
    %212 = vmatprep.subr.mxu0 0.0
    %213 = vmatpush2.msra.mxu0 0.0
    %214 = vmatprep.subr.mxu0 0.0
    %215 = vmatpush2.msra.mxu0 0.0
    %216 = vmatprep.subr.mxu0 0.0
    %217 = vmatpush2.msra.mxu0 0.0
    %218 = vmatprep.subr.mxu0 0.0
    %219 = vmatpush2.msra.mxu0 0.0
    %220 = vmatprep.subr.mxu0 0.0
    %221 = vmatpush2.msra.mxu0 0.0
    %222 = vmatprep.subr.mxu0 0.0
    %223 = vmatpush2.msra.mxu0 0.0
    %224 = vmatprep.subr.mxu0 0.0
    %225 = vmatpush2.msra.mxu0 0.0
    %226 = vmatprep.subr.mxu0 0.0
    %227 = vmatpush2.msra.mxu0 0.0
    %228 = vmatprep.mubr.f32.mxu0 0.0
    %229 = vmatmul.mubr.f32.gmra.mxu0 %v64
    %v230 = vpop.f32.mrf.mxu0
    %v231 = vadd.f32 %v45, %v230
    %v232 = vpop.f32.mrf.mxu0
    %v233 = vadd.f32 %v45, %v232
    %234 = vmatprep.mubr.f32.mxu0 0.0
    %235 = vmatmul.mubr.f32.gmra.mxu0 %v67
    %v236 = vpop.f32.mrf.mxu0
    %v237 = vadd.f32 %v50, %v236
    %v238 = vpop.f32.mrf.mxu0
    %v239 = vadd.f32 %v50, %v238
    %240 = vmatprep.mubr.f32.mxu0 0.0
    %241 = vmatmul.mubr.f32.gmra.mxu0 %v70
    %v242 = vpop.f32.mrf.mxu0
    %v243 = vadd.f32 %v55, %v242
    %v244 = vpop.f32.mrf.mxu0
    %v245 = vadd.f32 %v55, %v244
    %246 = vmatprep.mubr.f32.mxu0 0.0
    %247 = vmatmul.mubr.f32.gmra.mxu0 %v73
    %v248 = vpop.f32.mrf.mxu0
    %v249 = vadd.f32 %v60, %v248
    %v250 = vpop.f32.mrf.mxu0
    %v251 = vadd.f32 %v60, %v250
    %252 = vdwg.mxu0
    %253 = vst [vmem:[#allocation2] sm:$0xff] %v142
    %254 = vst [vmem:[#allocation2 + $0x8] sm:$0xff] %v144
    %255 = vst [vmem:[#allocation2 + $0x10] sm:$0xff] %v231
    %256 = vst [vmem:[#allocation2 + $0x18] sm:$0xff] %v233
    %257 = vst [vmem:[#allocation2 + $0x40] sm:$0xff] %v148
    %258 = vst [vmem:[#allocation2 + $0x48] sm:$0xff] %v150
    %259 = vst [vmem:[#allocation2 + $0x50] sm:$0xff] %v237
    %260 = vst [vmem:[#allocation2 + $0x58] sm:$0xff] %v239
    %261 = vst [vmem:[#allocation2 + $0x80] sm:$0xff] %v154
    %262 = vst [vmem:[#allocation2 + $0x88] sm:$0xff] %v156
    %263 = vst [vmem:[#allocation2 + $0x90] sm:$0xff] %v243
    %264 = vst [vmem:[#allocation2 + $0x98] sm:$0xff] %v245
    %265 = vst [vmem:[#allocation2 + $0xc0] sm:$0xff] %v160
    %266 = vst [vmem:[#allocation2 + $0xc8] sm:$0xff] %v162
    %267 = vst [vmem:[#allocation2 + $0xd0] sm:$0xff] %v249
    %268 = vst [vmem:[#allocation2 + $0xd8] sm:$0xff] %v251
    %269 = vst [vmem:[#allocation2 + $0x20] sm:$0xff] %v142
    %270 = vst [vmem:[#allocation2 + $0x28] sm:$0xff] %v144
    %271 = vst [vmem:[#allocation2 + $0x30] sm:$0xff] %v231
    %272 = vst [vmem:[#allocation2 + $0x38] sm:$0xff] %v233
    %273 = vst [vmem:[#allocation2 + $0x60] sm:$0xff] %v148
    %274 = vst [vmem:[#allocation2 + $0x68] sm:$0xff] %v150
    %275 = vst [vmem:[#allocation2 + $0x70] sm:$0xff] %v237
    %276 = vst [vmem:[#allocation2 + $0x78] sm:$0xff] %v239
    %277 = vst [vmem:[#allocation2 + $0xa0] sm:$0xff] %v154
    %278 = vst [vmem:[#allocation2 + $0xa8] sm:$0xff] %v156
    %279 = vst [vmem:[#allocation2 + $0xb0] sm:$0xff] %v243
    %280 = vst [vmem:[#allocation2 + $0xb8] sm:$0xff] %v245
    %281 = vst [vmem:[#allocation2 + $0xe0] sm:$0xff] %v160
    %282 = vst [vmem:[#allocation2 + $0xe8] sm:$0xff] %v162
    %283 = vst [vmem:[#allocation2 + $0xf0] sm:$0xff] %v249
    %284 = vst [vmem:[#allocation2 + $0xf8] sm:$0xff] %v251
    %v285 = vld [vmem:[%s3] sm:$0xff]
    %v286 = vld [vmem:[%s3 + $0x8] sm:$0xff]
    %v287 = vld [vmem:[%s3 + $0x10] sm:$0xff]
    %v288 = vld [vmem:[%s3 + $0x18] sm:$0xff]
    %v289 = vld [vmem:[#allocation2 + $0x18] sm:$0xff]
    %v290 = vld [vmem:[#allocation2 + $0x20] sm:$0xff]
    %v291 = vld [vmem:[#allocation2 + $0x28] sm:$0xff]
    %v292 = vld [vmem:[#allocation2 + $0x30] sm:$0xff]
    %v293 = vld [vmem:[#allocation2 + $0x38] sm:$0xff]
    %v294 = vld [vmem:[#allocation2 + $0x58] sm:$0xff]
    %v295 = vld [vmem:[#allocation2 + $0x60] sm:$0xff]
    %v296 = vld [vmem:[#allocation2 + $0x68] sm:$0xff]
    %v297 = vld [vmem:[#allocation2 + $0x70] sm:$0xff]
    %v298 = vld [vmem:[#allocation2 + $0x78] sm:$0xff]
    %v299 = vld [vmem:[#allocation2 + $0x98] sm:$0xff]
    %v300 = vld [vmem:[#allocation2 + $0xa0] sm:$0xff]
    %v301 = vld [vmem:[#allocation2 + $0xa8] sm:$0xff]
    %v302 = vld [vmem:[#allocation2 + $0xb0] sm:$0xff]
    %v303 = vld [vmem:[#allocation2 + $0xb8] sm:$0xff]
    %v304 = vld [vmem:[#allocation2 + $0xd8] sm:$0xff]
    %v305 = vld [vmem:[#allocation2 + $0xe0] sm:$0xff]
    %v306 = vld [vmem:[#allocation2 + $0xe8] sm:$0xff]
    %v307 = vld [vmem:[#allocation2 + $0xf0] sm:$0xff]
    %v308 = vld [vmem:[#allocation2 + $0xf8] sm:$0xff]
    %310 = vset.pattern.permute.xlu0 0
    %311 = vperm.xlu0 %310, %v285
    %v312 = vpop.permute.xlu0 %311
    %315 = vset.pattern.permute.xlu0 0
    %316 = vperm.xlu0 %315, %v286
    %v317 = vpop.permute.xlu0 %316
    %320 = vset.pattern.permute.xlu0 0
    %321 = vperm.xlu0 %320, %v287
    %v322 = vpop.permute.xlu0 %321
    %325 = vset.pattern.permute.xlu0 0
    %326 = vperm.xlu0 %325, %v288
    %v327 = vpop.permute.xlu0 %326
    %v329 = vmul.f32 %v289, %v312
    %v330 = vmul.f32 %v290, %v312
    %v331 = vmul.f32 %v291, %v312
    %v332 = vmul.f32 %v292, %v312
    %v333 = vmul.f32 %v293, %v312
    %v334 = vmul.f32 %v294, %v317
    %v335 = vmul.f32 %v295, %v317
    %v336 = vmul.f32 %v296, %v317
    %v337 = vmul.f32 %v297, %v317
    %v338 = vmul.f32 %v298, %v317
    %v339 = vmul.f32 %v299, %v322
    %v340 = vmul.f32 %v300, %v322
    %v341 = vmul.f32 %v301, %v322
    %v342 = vmul.f32 %v302, %v322
    %v343 = vmul.f32 %v303, %v322
    %v344 = vmul.f32 %v304, %v327
    %v345 = vmul.f32 %v305, %v327
    %v346 = vmul.f32 %v306, %v327
    %v347 = vmul.f32 %v307, %v327
    %v348 = vmul.f32 %v308, %v327
    %v349 = vld [vmem:[%s4] ss:$8 sm:$0xf]
    %v351 = vlaneseq
    %v352 = vshrl.u32 %v351, 7
    %v353 = vsub.s32 0, %v352
    %v354 = vrot.slane %v349, %v353
    %v355 = vlaneseq
    %v356 = vshrl.u32 %v355, 7
    %v357 = vsub.s32 1, %v356
    %v358 = vrot.slane %v349, %v357
    %v359 = vlaneseq
    %v360 = vshrl.u32 %v359, 7
    %v361 = vsub.s32 2, %v360
    %v362 = vrot.slane %v349, %v361
    %v363 = vlaneseq
    %v364 = vshrl.u32 %v363, 7
    %v365 = vsub.s32 3, %v364
    %v366 = vrot.slane %v349, %v365
    %367 = vrot.lane.b32.xlu0 %v354, 111
    %v368 = vpop.permute.xlu0 %367
    %369 = vrot.lane.b32.xlu0 %v358, 111
    %v370 = vpop.permute.xlu0 %369
    %371 = vrot.lane.b32.xlu0 %v362, 111
    %v372 = vpop.permute.xlu0 %371
    %373 = vrot.lane.b32.xlu0 %v366, 111
    %v374 = vpop.permute.xlu0 %373
    %vm375 = vcmask 908288
    %v376 = vsel %vm375, %v368, %v370
    %v377 = vsel %vm375, %v370, %v372
    %v378 = vsel %vm375, %v372, %v374
    %v384 = vmul.f32 %v329, %v368
    %v385 = vmul.f32 %v330, %v376
    %v386 = vmul.f32 %v331, %v377
    %v387 = vmul.f32 %v332, %v378
    %v388 = vmul.f32 %v333, %v374
    %v389 = vmul.f32 %v334, %v368
    %v390 = vmul.f32 %v335, %v376
    %v391 = vmul.f32 %v336, %v377
    %v392 = vmul.f32 %v337, %v378
    %v393 = vmul.f32 %v338, %v374
    %v394 = vmul.f32 %v339, %v368
    %v395 = vmul.f32 %v340, %v376
    %v396 = vmul.f32 %v341, %v377
    %v397 = vmul.f32 %v342, %v378
    %v398 = vmul.f32 %v343, %v374
    %v399 = vmul.f32 %v344, %v368
    %v400 = vmul.f32 %v345, %v376
    %v401 = vmul.f32 %v346, %v377
    %v402 = vmul.f32 %v347, %v378
    %v403 = vmul.f32 %v348, %v374
    %v404 = vadd.f32 %v384, 0.0
    %v405 = vadd.f32 %v385, 0.0
    %v406 = vadd.f32 %v386, 0.0
    %v407 = vadd.f32 %v387, 0.0
    %v408 = vadd.f32 %v388, 0.0
    %v409 = vadd.f32 %v389, 0.0
    %v410 = vadd.f32 %v390, 0.0
    %v411 = vadd.f32 %v391, 0.0
    %v412 = vadd.f32 %v392, 0.0
    %v413 = vadd.f32 %v393, 0.0
    %v414 = vadd.f32 %v394, 0.0
    %v415 = vadd.f32 %v395, 0.0
    %v416 = vadd.f32 %v396, 0.0
    %v417 = vadd.f32 %v397, 0.0
    %v418 = vadd.f32 %v398, 0.0
    %v419 = vadd.f32 %v399, 0.0
    %v420 = vadd.f32 %v400, 0.0
    %v421 = vadd.f32 %v401, 0.0
    %v422 = vadd.f32 %v402, 0.0
    %v423 = vadd.f32 %v403, 0.0
    %424 = vset.pattern.permute.xlu0 1
    %425 = vperm.xlu0 %424, %v285
    %v426 = vpop.permute.xlu0 %425
    %428 = vset.pattern.permute.xlu0 1
    %429 = vperm.xlu0 %428, %v286
    %v430 = vpop.permute.xlu0 %429
    %432 = vset.pattern.permute.xlu0 1
    %433 = vperm.xlu0 %432, %v287
    %v434 = vpop.permute.xlu0 %433
    %436 = vset.pattern.permute.xlu0 1
    %437 = vperm.xlu0 %436, %v288
    %v438 = vpop.permute.xlu0 %437
    %v440 = vmul.f32 %v289, %v426
    %v441 = vmul.f32 %v290, %v426
    %v442 = vmul.f32 %v291, %v426
    %v443 = vmul.f32 %v292, %v426
    %v444 = vmul.f32 %v293, %v426
    %v445 = vmul.f32 %v294, %v430
    %v446 = vmul.f32 %v295, %v430
    %v447 = vmul.f32 %v296, %v430
    %v448 = vmul.f32 %v297, %v430
    %v449 = vmul.f32 %v298, %v430
    %v450 = vmul.f32 %v299, %v434
    %v451 = vmul.f32 %v300, %v434
    %v452 = vmul.f32 %v301, %v434
    %v453 = vmul.f32 %v302, %v434
    %v454 = vmul.f32 %v303, %v434
    %v455 = vmul.f32 %v304, %v438
    %v456 = vmul.f32 %v305, %v438
    %v457 = vmul.f32 %v306, %v438
    %v458 = vmul.f32 %v307, %v438
    %v459 = vmul.f32 %v308, %v438
    %s460 = scalar_lea.vmem %s4, 1
    %v461 = vld [vmem:[%s460] ss:$8 sm:$0xf]
    %v463 = vlaneseq
    %v464 = vshrl.u32 %v463, 7
    %v465 = vsub.s32 0, %v464
    %v466 = vrot.slane %v461, %v465
    %v467 = vlaneseq
    %v468 = vshrl.u32 %v467, 7
    %v469 = vsub.s32 1, %v468
    %v470 = vrot.slane %v461, %v469
    %v471 = vlaneseq
    %v472 = vshrl.u32 %v471, 7
    %v473 = vsub.s32 2, %v472
    %v474 = vrot.slane %v461, %v473
    %v475 = vlaneseq
    %v476 = vshrl.u32 %v475, 7
    %v477 = vsub.s32 3, %v476
    %v478 = vrot.slane %v461, %v477
    %479 = vrot.lane.b32.xlu0 %v466, 112
    %v480 = vpop.permute.xlu0 %479
    %481 = vrot.lane.b32.xlu0 %v470, 112
    %v482 = vpop.permute.xlu0 %481
    %483 = vrot.lane.b32.xlu0 %v474, 112
    %v484 = vpop.permute.xlu0 %483
    %485 = vrot.lane.b32.xlu0 %v478, 112
    %v486 = vpop.permute.xlu0 %485
    %vm487 = vcmask 916480
    %v488 = vsel %vm487, %v480, %v482
    %v489 = vsel %vm487, %v482, %v484
    %v490 = vsel %vm487, %v484, %v486
    %v496 = vmul.f32 %v440, %v480
    %v497 = vmul.f32 %v441, %v488
    %v498 = vmul.f32 %v442, %v489
    %v499 = vmul.f32 %v443, %v490
    %v500 = vmul.f32 %v444, %v486
    %v501 = vmul.f32 %v445, %v480
    %v502 = vmul.f32 %v446, %v488
    %v503 = vmul.f32 %v447, %v489
    %v504 = vmul.f32 %v448, %v490
    %v505 = vmul.f32 %v449, %v486
    %v506 = vmul.f32 %v450, %v480
    %v507 = vmul.f32 %v451, %v488
    %v508 = vmul.f32 %v452, %v489
    %v509 = vmul.f32 %v453, %v490
    %v510 = vmul.f32 %v454, %v486
    %v511 = vmul.f32 %v455, %v480
    %v512 = vmul.f32 %v456, %v488
    %v513 = vmul.f32 %v457, %v489
    %v514 = vmul.f32 %v458, %v490
    %v515 = vmul.f32 %v459, %v486
    %536 = vrot.lane.b32.xlu0 %v496, 127
    %v537 = vpop.permute.xlu0 %536
    %538 = vrot.lane.b32.xlu0 %v497, 127
    %v539 = vpop.permute.xlu0 %538
    %540 = vrot.lane.b32.xlu0 %v498, 127
    %v541 = vpop.permute.xlu0 %540
    %542 = vrot.lane.b32.xlu0 %v499, 127
    %v543 = vpop.permute.xlu0 %542
    %544 = vrot.lane.b32.xlu0 %v500, 127
    %v545 = vpop.permute.xlu0 %544
    %546 = vrot.lane.b32.xlu0 %v501, 127
    %v547 = vpop.permute.xlu0 %546
    %548 = vrot.lane.b32.xlu0 %v502, 127
    %v549 = vpop.permute.xlu0 %548
    %550 = vrot.lane.b32.xlu0 %v503, 127
    %v551 = vpop.permute.xlu0 %550
    %552 = vrot.lane.b32.xlu0 %v504, 127
    %v553 = vpop.permute.xlu0 %552
    %554 = vrot.lane.b32.xlu0 %v505, 127
    %v555 = vpop.permute.xlu0 %554
    %556 = vrot.lane.b32.xlu0 %v506, 127
    %v557 = vpop.permute.xlu0 %556
    %558 = vrot.lane.b32.xlu0 %v507, 127
    %v559 = vpop.permute.xlu0 %558
    %560 = vrot.lane.b32.xlu0 %v508, 127
    %v561 = vpop.permute.xlu0 %560
    %562 = vrot.lane.b32.xlu0 %v509, 127
    %v563 = vpop.permute.xlu0 %562
    %564 = vrot.lane.b32.xlu0 %v510, 127
    %v565 = vpop.permute.xlu0 %564
    %566 = vrot.lane.b32.xlu0 %v511, 127
    %v567 = vpop.permute.xlu0 %566
    %568 = vrot.lane.b32.xlu0 %v512, 127
    %v569 = vpop.permute.xlu0 %568
    %570 = vrot.lane.b32.xlu0 %v513, 127
    %v571 = vpop.permute.xlu0 %570
    %572 = vrot.lane.b32.xlu0 %v514, 127
    %v573 = vpop.permute.xlu0 %572
    %574 = vrot.lane.b32.xlu0 %v515, 127
    %v575 = vpop.permute.xlu0 %574
    %vm576 = vcmask 1039360
    %v577 = vsel %vm576, %v537, %v539
    %v578 = vsel %vm576, %v539, %v541
    %v579 = vsel %vm576, %v541, %v543
    %v580 = vsel %vm576, %v543, %v545
    %v581 = vsel %vm576, %v547, %v549
    %v582 = vsel %vm576, %v549, %v551
    %v583 = vsel %vm576, %v551, %v553
    %v584 = vsel %vm576, %v553, %v555
    %v585 = vsel %vm576, %v557, %v559
    %v586 = vsel %vm576, %v559, %v561
    %v587 = vsel %vm576, %v561, %v563
    %v588 = vsel %vm576, %v563, %v565
    %v589 = vsel %vm576, %v567, %v569
    %v590 = vsel %vm576, %v569, %v571
    %v591 = vsel %vm576, %v571, %v573
    %v592 = vsel %vm576, %v573, %v575
    %v613 = vadd.f32 %v404, %v577
    %v614 = vadd.f32 %v405, %v578
    %v615 = vadd.f32 %v406, %v579
    %v616 = vadd.f32 %v407, %v580
    %v617 = vadd.f32 %v408, %v545
    %v618 = vadd.f32 %v409, %v581
    %v619 = vadd.f32 %v410, %v582
    %v620 = vadd.f32 %v411, %v583
    %v621 = vadd.f32 %v412, %v584
    %v622 = vadd.f32 %v413, %v555
    %v623 = vadd.f32 %v414, %v585
    %v624 = vadd.f32 %v415, %v586
    %v625 = vadd.f32 %v416, %v587
    %v626 = vadd.f32 %v417, %v588
    %v627 = vadd.f32 %v418, %v565
    %v628 = vadd.f32 %v419, %v589
    %v629 = vadd.f32 %v420, %v590
    %v630 = vadd.f32 %v421, %v591
    %v631 = vadd.f32 %v422, %v592
    %v632 = vadd.f32 %v423, %v575
    %633 = vset.pattern.permute.xlu0 2
    %634 = vperm.xlu0 %633, %v285
    %v635 = vpop.permute.xlu0 %634
    %637 = vset.pattern.permute.xlu0 2
    %638 = vperm.xlu0 %637, %v286
    %v639 = vpop.permute.xlu0 %638
    %641 = vset.pattern.permute.xlu0 2
    %642 = vperm.xlu0 %641, %v287
    %v643 = vpop.permute.xlu0 %642
    %645 = vset.pattern.permute.xlu0 2
    %646 = vperm.xlu0 %645, %v288
    %v647 = vpop.permute.xlu0 %646
    %v649 = vmul.f32 %v289, %v635
    %v650 = vmul.f32 %v290, %v635
    %v651 = vmul.f32 %v291, %v635
    %v652 = vmul.f32 %v292, %v635
    %v653 = vmul.f32 %v293, %v635
    %v654 = vmul.f32 %v294, %v639
    %v655 = vmul.f32 %v295, %v639
    %v656 = vmul.f32 %v296, %v639
    %v657 = vmul.f32 %v297, %v639
    %v658 = vmul.f32 %v298, %v639
    %v659 = vmul.f32 %v299, %v643
    %v660 = vmul.f32 %v300, %v643
    %v661 = vmul.f32 %v301, %v643
    %v662 = vmul.f32 %v302, %v643
    %v663 = vmul.f32 %v303, %v643
    %v664 = vmul.f32 %v304, %v647
    %v665 = vmul.f32 %v305, %v647
    %v666 = vmul.f32 %v306, %v647
    %v667 = vmul.f32 %v307, %v647
    %v668 = vmul.f32 %v308, %v647
    %s669 = scalar_lea.vmem %s4, 2
    %v670 = vld [vmem:[%s669] ss:$8 sm:$0xf]
    %v672 = vlaneseq
    %v673 = vshrl.u32 %v672, 7
    %v674 = vsub.s32 0, %v673
    %v675 = vrot.slane %v670, %v674
    %v676 = vlaneseq
    %v677 = vshrl.u32 %v676, 7
    %v678 = vsub.s32 1, %v677
    %v679 = vrot.slane %v670, %v678
    %v680 = vlaneseq
    %v681 = vshrl.u32 %v680, 7
    %v682 = vsub.s32 2, %v681
    %v683 = vrot.slane %v670, %v682
    %v684 = vlaneseq
    %v685 = vshrl.u32 %v684, 7
    %v686 = vsub.s32 3, %v685
    %v687 = vrot.slane %v670, %v686
    %688 = vrot.lane.b32.xlu0 %v675, 113
    %v689 = vpop.permute.xlu0 %688
    %690 = vrot.lane.b32.xlu0 %v679, 113
    %v691 = vpop.permute.xlu0 %690
    %692 = vrot.lane.b32.xlu0 %v683, 113
    %v693 = vpop.permute.xlu0 %692
    %694 = vrot.lane.b32.xlu0 %v687, 113
    %v695 = vpop.permute.xlu0 %694
    %vm696 = vcmask 924672
    %v697 = vsel %vm696, %v689, %v691
    %v698 = vsel %vm696, %v691, %v693
    %v699 = vsel %vm696, %v693, %v695
    %v705 = vmul.f32 %v649, %v689
    %v706 = vmul.f32 %v650, %v697
    %v707 = vmul.f32 %v651, %v698
    %v708 = vmul.f32 %v652, %v699
    %v709 = vmul.f32 %v653, %v695
    %v710 = vmul.f32 %v654, %v689
    %v711 = vmul.f32 %v655, %v697
    %v712 = vmul.f32 %v656, %v698
    %v713 = vmul.f32 %v657, %v699
    %v714 = vmul.f32 %v658, %v695
    %v715 = vmul.f32 %v659, %v689
    %v716 = vmul.f32 %v660, %v697
    %v717 = vmul.f32 %v661, %v698
    %v718 = vmul.f32 %v662, %v699
    %v719 = vmul.f32 %v663, %v695
    %v720 = vmul.f32 %v664, %v689
    %v721 = vmul.f32 %v665, %v697
    %v722 = vmul.f32 %v666, %v698
    %v723 = vmul.f32 %v667, %v699
    %v724 = vmul.f32 %v668, %v695
    %745 = vrot.lane.b32.xlu0 %v705, 126
    %v746 = vpop.permute.xlu0 %745
    %747 = vrot.lane.b32.xlu0 %v706, 126
    %v748 = vpop.permute.xlu0 %747
    %749 = vrot.lane.b32.xlu0 %v707, 126
    %v750 = vpop.permute.xlu0 %749
    %751 = vrot.lane.b32.xlu0 %v708, 126
    %v752 = vpop.permute.xlu0 %751
    %753 = vrot.lane.b32.xlu0 %v709, 126
    %v754 = vpop.permute.xlu0 %753
    %755 = vrot.lane.b32.xlu0 %v710, 126
    %v756 = vpop.permute.xlu0 %755
    %757 = vrot.lane.b32.xlu0 %v711, 126
    %v758 = vpop.permute.xlu0 %757
    %759 = vrot.lane.b32.xlu0 %v712, 126
    %v760 = vpop.permute.xlu0 %759
    %761 = vrot.lane.b32.xlu0 %v713, 126
    %v762 = vpop.permute.xlu0 %761
    %763 = vrot.lane.b32.xlu0 %v714, 126
    %v764 = vpop.permute.xlu0 %763
    %765 = vrot.lane.b32.xlu0 %v715, 126
    %v766 = vpop.permute.xlu0 %765
    %767 = vrot.lane.b32.xlu0 %v716, 126
    %v768 = vpop.permute.xlu0 %767
    %769 = vrot.lane.b32.xlu0 %v717, 126
    %v770 = vpop.permute.xlu0 %769
    %771 = vrot.lane.b32.xlu0 %v718, 126
    %v772 = vpop.permute.xlu0 %771
    %773 = vrot.lane.b32.xlu0 %v719, 126
    %v774 = vpop.permute.xlu0 %773
    %775 = vrot.lane.b32.xlu0 %v720, 126
    %v776 = vpop.permute.xlu0 %775
    %777 = vrot.lane.b32.xlu0 %v721, 126
    %v778 = vpop.permute.xlu0 %777
    %779 = vrot.lane.b32.xlu0 %v722, 126
    %v780 = vpop.permute.xlu0 %779
    %781 = vrot.lane.b32.xlu0 %v723, 126
    %v782 = vpop.permute.xlu0 %781
    %783 = vrot.lane.b32.xlu0 %v724, 126
    %v784 = vpop.permute.xlu0 %783
    %vm785 = vcmask 1031168
    %v786 = vsel %vm785, %v746, %v748
    %v787 = vsel %vm785, %v748, %v750
    %v788 = vsel %vm785, %v750, %v752
    %v789 = vsel %vm785, %v752, %v754
    %v790 = vsel %vm785, %v756, %v758
    %v791 = vsel %vm785, %v758, %v760
    %v792 = vsel %vm785, %v760, %v762
    %v793 = vsel %vm785, %v762, %v764
    %v794 = vsel %vm785, %v766, %v768
    %v795 = vsel %vm785, %v768, %v770
    %v796 = vsel %vm785, %v770, %v772
    %v797 = vsel %vm785, %v772, %v774
    %v798 = vsel %vm785, %v776, %v778
    %v799 = vsel %vm785, %v778, %v780
    %v800 = vsel %vm785, %v780, %v782
    %v801 = vsel %vm785, %v782, %v784
    %v822 = vadd.f32 %v613, %v786
    %v823 = vadd.f32 %v614, %v787
    %v824 = vadd.f32 %v615, %v788
    %v825 = vadd.f32 %v616, %v789
    %v826 = vadd.f32 %v617, %v754
    %v827 = vadd.f32 %v618, %v790
    %v828 = vadd.f32 %v619, %v791
    %v829 = vadd.f32 %v620, %v792
    %v830 = vadd.f32 %v621, %v793
    %v831 = vadd.f32 %v622, %v764
    %v832 = vadd.f32 %v623, %v794
    %v833 = vadd.f32 %v624, %v795
    %v834 = vadd.f32 %v625, %v796
    %v835 = vadd.f32 %v626, %v797
    %v836 = vadd.f32 %v627, %v774
    %v837 = vadd.f32 %v628, %v798
    %v838 = vadd.f32 %v629, %v799
    %v839 = vadd.f32 %v630, %v800
    %v840 = vadd.f32 %v631, %v801
    %v841 = vadd.f32 %v632, %v784
    %842 = vset.pattern.permute.xlu0 3
    %843 = vperm.xlu0 %842, %v285
    %v844 = vpop.permute.xlu0 %843
    %846 = vset.pattern.permute.xlu0 3
    %847 = vperm.xlu0 %846, %v286
    %v848 = vpop.permute.xlu0 %847
    %850 = vset.pattern.permute.xlu0 3
    %851 = vperm.xlu0 %850, %v287
    %v852 = vpop.permute.xlu0 %851
    %854 = vset.pattern.permute.xlu0 3
    %855 = vperm.xlu0 %854, %v288
    %v856 = vpop.permute.xlu0 %855
    %v858 = vmul.f32 %v289, %v844
    %v859 = vmul.f32 %v290, %v844
    %v860 = vmul.f32 %v291, %v844
    %v861 = vmul.f32 %v292, %v844
    %v862 = vmul.f32 %v293, %v844
    %v863 = vmul.f32 %v294, %v848
    %v864 = vmul.f32 %v295, %v848
    %v865 = vmul.f32 %v296, %v848
    %v866 = vmul.f32 %v297, %v848
    %v867 = vmul.f32 %v298, %v848
    %v868 = vmul.f32 %v299, %v852
    %v869 = vmul.f32 %v300, %v852
    %v870 = vmul.f32 %v301, %v852
    %v871 = vmul.f32 %v302, %v852
    %v872 = vmul.f32 %v303, %v852
    %v873 = vmul.f32 %v304, %v856
    %v874 = vmul.f32 %v305, %v856
    %v875 = vmul.f32 %v306, %v856
    %v876 = vmul.f32 %v307, %v856
    %v877 = vmul.f32 %v308, %v856
    %s878 = scalar_lea.vmem %s4, 3
    %v879 = vld [vmem:[%s878] ss:$8 sm:$0xf]
    %v881 = vlaneseq
    %v882 = vshrl.u32 %v881, 7
    %v883 = vsub.s32 0, %v882
    %v884 = vrot.slane %v879, %v883
    %v885 = vlaneseq
    %v886 = vshrl.u32 %v885, 7
    %v887 = vsub.s32 1, %v886
    %v888 = vrot.slane %v879, %v887
    %v889 = vlaneseq
    %v890 = vshrl.u32 %v889, 7
    %v891 = vsub.s32 2, %v890
    %v892 = vrot.slane %v879, %v891
    %v893 = vlaneseq
    %v894 = vshrl.u32 %v893, 7
    %v895 = vsub.s32 3, %v894
    %v896 = vrot.slane %v879, %v895
    %897 = vrot.lane.b32.xlu0 %v884, 127
    %v898 = vpop.permute.xlu0 %897
    %899 = vrot.lane.b32.xlu0 %v888, 127
    %v900 = vpop.permute.xlu0 %899
    %901 = vrot.lane.b32.xlu0 %v892, 127
    %v902 = vpop.permute.xlu0 %901
    %903 = vrot.lane.b32.xlu0 %v896, 127
    %v904 = vpop.permute.xlu0 %903
    %v905 = vsel %vm576, %v898, %v900
    %v906 = vsel %vm576, %v900, %v902
    %v907 = vsel %vm576, %v902, %v904
    %v913 = vmul.f32 %v858, %v898
    %v914 = vmul.f32 %v859, %v905
    %v915 = vmul.f32 %v860, %v906
    %v916 = vmul.f32 %v861, %v907
    %v917 = vmul.f32 %v862, %v904
    %v918 = vmul.f32 %v863, %v898
    %v919 = vmul.f32 %v864, %v905
    %v920 = vmul.f32 %v865, %v906
    %v921 = vmul.f32 %v866, %v907
    %v922 = vmul.f32 %v867, %v904
    %v923 = vmul.f32 %v868, %v898
    %v924 = vmul.f32 %v869, %v905
    %v925 = vmul.f32 %v870, %v906
    %v926 = vmul.f32 %v871, %v907
    %v927 = vmul.f32 %v872, %v904
    %v928 = vmul.f32 %v873, %v898
    %v929 = vmul.f32 %v874, %v905
    %v930 = vmul.f32 %v875, %v906
    %v931 = vmul.f32 %v876, %v907
    %v932 = vmul.f32 %v877, %v904
    %953 = vrot.lane.b32.xlu0 %v913, 112
    %v954 = vpop.permute.xlu0 %953
    %955 = vrot.lane.b32.xlu0 %v914, 112
    %v956 = vpop.permute.xlu0 %955
    %957 = vrot.lane.b32.xlu0 %v915, 112
    %v958 = vpop.permute.xlu0 %957
    %959 = vrot.lane.b32.xlu0 %v916, 112
    %v960 = vpop.permute.xlu0 %959
    %961 = vrot.lane.b32.xlu0 %v917, 112
    %v962 = vpop.permute.xlu0 %961
    %963 = vrot.lane.b32.xlu0 %v918, 112
    %v964 = vpop.permute.xlu0 %963
    %965 = vrot.lane.b32.xlu0 %v919, 112
    %v966 = vpop.permute.xlu0 %965
    %967 = vrot.lane.b32.xlu0 %v920, 112
    %v968 = vpop.permute.xlu0 %967
    %969 = vrot.lane.b32.xlu0 %v921, 112
    %v970 = vpop.permute.xlu0 %969
    %971 = vrot.lane.b32.xlu0 %v922, 112
    %v972 = vpop.permute.xlu0 %971
    %973 = vrot.lane.b32.xlu0 %v923, 112
    %v974 = vpop.permute.xlu0 %973
    %975 = vrot.lane.b32.xlu0 %v924, 112
    %v976 = vpop.permute.xlu0 %975
    %977 = vrot.lane.b32.xlu0 %v925, 112
    %v978 = vpop.permute.xlu0 %977
    %979 = vrot.lane.b32.xlu0 %v926, 112
    %v980 = vpop.permute.xlu0 %979
    %981 = vrot.lane.b32.xlu0 %v927, 112
    %v982 = vpop.permute.xlu0 %981
    %983 = vrot.lane.b32.xlu0 %v928, 112
    %v984 = vpop.permute.xlu0 %983
    %985 = vrot.lane.b32.xlu0 %v929, 112
    %v986 = vpop.permute.xlu0 %985
    %987 = vrot.lane.b32.xlu0 %v930, 112
    %v988 = vpop.permute.xlu0 %987
    %989 = vrot.lane.b32.xlu0 %v931, 112
    %v990 = vpop.permute.xlu0 %989
    %991 = vrot.lane.b32.xlu0 %v932, 112
    %v992 = vpop.permute.xlu0 %991
    %v993 = vsel %vm487, %v954, %v956
    %v994 = vsel %vm487, %v956, %v958
    %v995 = vsel %vm487, %v958, %v960
    %v996 = vsel %vm487, %v960, %v962
    %v997 = vsel %vm487, %v964, %v966
    %v998 = vsel %vm487, %v966, %v968
    %v999 = vsel %vm487, %v968, %v970
    %v1000 = vsel %vm487, %v970, %v972
    %v1001 = vsel %vm487, %v974, %v976
    %v1002 = vsel %vm487, %v976, %v978
    %v1003 = vsel %vm487, %v978, %v980
    %v1004 = vsel %vm487, %v980, %v982
    %v1005 = vsel %vm487, %v984, %v986
    %v1006 = vsel %vm487, %v986, %v988
    %v1007 = vsel %vm487, %v988, %v990
    %v1008 = vsel %vm487, %v990, %v992
    %v1029 = vadd.f32 %v822, %v993
    %v1030 = vadd.f32 %v823, %v994
    %v1031 = vadd.f32 %v824, %v995
    %v1032 = vadd.f32 %v825, %v996
    %v1033 = vadd.f32 %v826, %v962
    %v1034 = vadd.f32 %v827, %v997
    %v1035 = vadd.f32 %v828, %v998
    %v1036 = vadd.f32 %v829, %v999
    %v1037 = vadd.f32 %v830, %v1000
    %v1038 = vadd.f32 %v831, %v972
    %v1039 = vadd.f32 %v832, %v1001
    %v1040 = vadd.f32 %v833, %v1002
    %v1041 = vadd.f32 %v834, %v1003
    %v1042 = vadd.f32 %v835, %v1004
    %v1043 = vadd.f32 %v836, %v982
    %v1044 = vadd.f32 %v837, %v1005
    %v1045 = vadd.f32 %v838, %v1006
    %v1046 = vadd.f32 %v839, %v1007
    %v1047 = vadd.f32 %v840, %v1008
    %v1048 = vadd.f32 %v841, %v992
    %1049 = vset.pattern.permute.xlu0 4
    %1050 = vperm.xlu0 %1049, %v285
    %v1051 = vpop.permute.xlu0 %1050
    %1053 = vset.pattern.permute.xlu0 4
    %1054 = vperm.xlu0 %1053, %v286
    %v1055 = vpop.permute.xlu0 %1054
    %1057 = vset.pattern.permute.xlu0 4
    %1058 = vperm.xlu0 %1057, %v287
    %v1059 = vpop.permute.xlu0 %1058
    %1061 = vset.pattern.permute.xlu0 4
    %1062 = vperm.xlu0 %1061, %v288
    %v1063 = vpop.permute.xlu0 %1062
    %v1065 = vmul.f32 %v142, %v1051
    %v1066 = vmul.f32 %v144, %v1051
    %v1067 = vmul.f32 %v231, %v1051
    %v1068 = vmul.f32 %v233, %v1051
    %v1069 = vmul.f32 %v148, %v1055
    %v1070 = vmul.f32 %v150, %v1055
    %v1071 = vmul.f32 %v237, %v1055
    %v1072 = vmul.f32 %v239, %v1055
    %v1073 = vmul.f32 %v154, %v1059
    %v1074 = vmul.f32 %v156, %v1059
    %v1075 = vmul.f32 %v243, %v1059
    %v1076 = vmul.f32 %v245, %v1059
    %v1077 = vmul.f32 %v160, %v1063
    %v1078 = vmul.f32 %v162, %v1063
    %v1079 = vmul.f32 %v249, %v1063
    %v1080 = vmul.f32 %v251, %v1063
    %1097 = vrot.lane.b32.xlu0 %v1065, 111
    %v1098 = vpop.permute.xlu0 %1097
    %1099 = vrot.lane.b32.xlu0 %v1066, 111
    %v1100 = vpop.permute.xlu0 %1099
    %1101 = vrot.lane.b32.xlu0 %v1067, 111
    %v1102 = vpop.permute.xlu0 %1101
    %1103 = vrot.lane.b32.xlu0 %v1068, 111
    %v1104 = vpop.permute.xlu0 %1103
    %1105 = vrot.lane.b32.xlu0 %v1069, 111
    %v1106 = vpop.permute.xlu0 %1105
    %1107 = vrot.lane.b32.xlu0 %v1070, 111
    %v1108 = vpop.permute.xlu0 %1107
    %1109 = vrot.lane.b32.xlu0 %v1071, 111
    %v1110 = vpop.permute.xlu0 %1109
    %1111 = vrot.lane.b32.xlu0 %v1072, 111
    %v1112 = vpop.permute.xlu0 %1111
    %1113 = vrot.lane.b32.xlu0 %v1073, 111
    %v1114 = vpop.permute.xlu0 %1113
    %1115 = vrot.lane.b32.xlu0 %v1074, 111
    %v1116 = vpop.permute.xlu0 %1115
    %1117 = vrot.lane.b32.xlu0 %v1075, 111
    %v1118 = vpop.permute.xlu0 %1117
    %1119 = vrot.lane.b32.xlu0 %v1076, 111
    %v1120 = vpop.permute.xlu0 %1119
    %1121 = vrot.lane.b32.xlu0 %v1077, 111
    %v1122 = vpop.permute.xlu0 %1121
    %1123 = vrot.lane.b32.xlu0 %v1078, 111
    %v1124 = vpop.permute.xlu0 %1123
    %1125 = vrot.lane.b32.xlu0 %v1079, 111
    %v1126 = vpop.permute.xlu0 %1125
    %1127 = vrot.lane.b32.xlu0 %v1080, 111
    %v1128 = vpop.permute.xlu0 %1127
    %v1129 = vsel %vm375, %v1098, %v1100
    %v1130 = vsel %vm375, %v1100, %v1102
    %v1131 = vsel %vm375, %v1102, %v1104
    %v1132 = vsel %vm375, %v1106, %v1108
    %v1133 = vsel %vm375, %v1108, %v1110
    %v1134 = vsel %vm375, %v1110, %v1112
    %v1135 = vsel %vm375, %v1114, %v1116
    %v1136 = vsel %vm375, %v1116, %v1118
    %v1137 = vsel %vm375, %v1118, %v1120
    %v1138 = vsel %vm375, %v1122, %v1124
    %v1139 = vsel %vm375, %v1124, %v1126
    %v1140 = vsel %vm375, %v1126, %v1128
    %v1161 = vadd.f32 %v1029, %v1098
    %v1162 = vadd.f32 %v1030, %v1129
    %v1163 = vadd.f32 %v1031, %v1130
    %v1164 = vadd.f32 %v1032, %v1131
    %v1165 = vadd.f32 %v1033, %v1104
    %v1166 = vadd.f32 %v1034, %v1106
    %v1167 = vadd.f32 %v1035, %v1132
    %v1168 = vadd.f32 %v1036, %v1133
    %v1169 = vadd.f32 %v1037, %v1134
    %v1170 = vadd.f32 %v1038, %v1112
    %v1171 = vadd.f32 %v1039, %v1114
    %v1172 = vadd.f32 %v1040, %v1135
    %v1173 = vadd.f32 %v1041, %v1136
    %v1174 = vadd.f32 %v1042, %v1137
    %v1175 = vadd.f32 %v1043, %v1120
    %v1176 = vadd.f32 %v1044, %v1122
    %v1177 = vadd.f32 %v1045, %v1138
    %v1178 = vadd.f32 %v1046, %v1139
    %v1179 = vadd.f32 %v1047, %v1140
    %v1180 = vadd.f32 %v1048, %v1128
    %v1181 = vld [vmem:[#allocation2] sm:$0xff]
    %v1182 = vld [vmem:[#allocation2 + $0x8] sm:$0xff]
    %v1183 = vld [vmem:[#allocation2 + $0x10] sm:$0xff]
    %v1184 = vld [vmem:[#allocation2 + $0x18] sm:$0xff]
    %v1185 = vld [vmem:[#allocation2 + $0x20] sm:$0xff]
    %v1186 = vld [vmem:[#allocation2 + $0x40] sm:$0xff]
    %v1187 = vld [vmem:[#allocation2 + $0x48] sm:$0xff]
    %v1188 = vld [vmem:[#allocation2 + $0x50] sm:$0xff]
    %v1189 = vld [vmem:[#allocation2 + $0x58] sm:$0xff]
    %v1190 = vld [vmem:[#allocation2 + $0x60] sm:$0xff]
    %v1191 = vld [vmem:[#allocation2 + $0x80] sm:$0xff]
    %v1192 = vld [vmem:[#allocation2 + $0x88] sm:$0xff]
    %v1193 = vld [vmem:[#allocation2 + $0x90] sm:$0xff]
    %v1194 = vld [vmem:[#allocation2 + $0x98] sm:$0xff]
    %v1195 = vld [vmem:[#allocation2 + $0xa0] sm:$0xff]
    %v1196 = vld [vmem:[#allocation2 + $0xc0] sm:$0xff]
    %v1197 = vld [vmem:[#allocation2 + $0xc8] sm:$0xff]
    %v1198 = vld [vmem:[#allocation2 + $0xd0] sm:$0xff]
    %v1199 = vld [vmem:[#allocation2 + $0xd8] sm:$0xff]
    %v1200 = vld [vmem:[#allocation2 + $0xe0] sm:$0xff]
    %1201 = vset.pattern.permute.xlu0 5
    %1202 = vperm.xlu0 %1201, %v285
    %v1203 = vpop.permute.xlu0 %1202
    %1205 = vset.pattern.permute.xlu0 5
    %1206 = vperm.xlu0 %1205, %v286
    %v1207 = vpop.permute.xlu0 %1206
    %1209 = vset.pattern.permute.xlu0 5
    %1210 = vperm.xlu0 %1209, %v287
    %v1211 = vpop.permute.xlu0 %1210
    %1213 = vset.pattern.permute.xlu0 5
    %1214 = vperm.xlu0 %1213, %v288
    %v1215 = vpop.permute.xlu0 %1214
    %v1217 = vmul.f32 %v1181, %v1203
    %v1218 = vmul.f32 %v1182, %v1203
    %v1219 = vmul.f32 %v1183, %v1203
    %v1220 = vmul.f32 %v1184, %v1203
    %v1221 = vmul.f32 %v1185, %v1203
    %v1222 = vmul.f32 %v1186, %v1207
    %v1223 = vmul.f32 %v1187, %v1207
    %v1224 = vmul.f32 %v1188, %v1207
    %v1225 = vmul.f32 %v1189, %v1207
    %v1226 = vmul.f32 %v1190, %v1207
    %v1227 = vmul.f32 %v1191, %v1211
    %v1228 = vmul.f32 %v1192, %v1211
    %v1229 = vmul.f32 %v1193, %v1211
    %v1230 = vmul.f32 %v1194, %v1211
    %v1231 = vmul.f32 %v1195, %v1211
    %v1232 = vmul.f32 %v1196, %v1215
    %v1233 = vmul.f32 %v1197, %v1215
    %v1234 = vmul.f32 %v1198, %v1215
    %v1235 = vmul.f32 %v1199, %v1215
    %v1236 = vmul.f32 %v1200, %v1215
    %s1237 = scalar_lea.vmem %s4, 5
    %v1238 = vld [vmem:[%s1237] ss:$8 sm:$0xf]
    %v1240 = vlaneseq
    %v1241 = vshrl.u32 %v1240, 7
    %v1242 = vsub.s32 0, %v1241
    %v1243 = vrot.slane %v1238, %v1242
    %v1244 = vlaneseq
    %v1245 = vshrl.u32 %v1244, 7
    %v1246 = vsub.s32 1, %v1245
    %v1247 = vrot.slane %v1238, %v1246
    %v1248 = vlaneseq
    %v1249 = vshrl.u32 %v1248, 7
    %v1250 = vsub.s32 2, %v1249
    %v1251 = vrot.slane %v1238, %v1250
    %v1252 = vlaneseq
    %v1253 = vshrl.u32 %v1252, 7
    %v1254 = vsub.s32 3, %v1253
    %v1255 = vrot.slane %v1238, %v1254
    %1256 = vrot.lane.b32.xlu0 %v1243, 1
    %v1257 = vpop.permute.xlu0 %1256
    %1258 = vrot.lane.b32.xlu0 %v1247, 1
    %v1259 = vpop.permute.xlu0 %1258
    %1260 = vrot.lane.b32.xlu0 %v1251, 1
    %v1261 = vpop.permute.xlu0 %1260
    %1262 = vrot.lane.b32.xlu0 %v1255, 1
    %v1263 = vpop.permute.xlu0 %1262
    %vm1264 = vcmask 7168
    %v1265 = vsel %vm1264, %v1257, %v1259
    %v1266 = vsel %vm1264, %v1259, %v1261
    %v1267 = vsel %vm1264, %v1261, %v1263
    %v1273 = vmul.f32 %v1217, %v1257
    %v1274 = vmul.f32 %v1218, %v1265
    %v1275 = vmul.f32 %v1219, %v1266
    %v1276 = vmul.f32 %v1220, %v1267
    %v1277 = vmul.f32 %v1221, %v1263
    %v1278 = vmul.f32 %v1222, %v1257
    %v1279 = vmul.f32 %v1223, %v1265
    %v1280 = vmul.f32 %v1224, %v1266
    %v1281 = vmul.f32 %v1225, %v1267
    %v1282 = vmul.f32 %v1226, %v1263
    %v1283 = vmul.f32 %v1227, %v1257
    %v1284 = vmul.f32 %v1228, %v1265
    %v1285 = vmul.f32 %v1229, %v1266
    %v1286 = vmul.f32 %v1230, %v1267
    %v1287 = vmul.f32 %v1231, %v1263
    %v1288 = vmul.f32 %v1232, %v1257
    %v1289 = vmul.f32 %v1233, %v1265
    %v1290 = vmul.f32 %v1234, %v1266
    %v1291 = vmul.f32 %v1235, %v1267
    %v1292 = vmul.f32 %v1236, %v1263
    %1313 = vrot.lane.b32.xlu0 %v1273, 110
    %v1314 = vpop.permute.xlu0 %1313
    %1315 = vrot.lane.b32.xlu0 %v1274, 110
    %v1316 = vpop.permute.xlu0 %1315
    %1317 = vrot.lane.b32.xlu0 %v1275, 110
    %v1318 = vpop.permute.xlu0 %1317
    %1319 = vrot.lane.b32.xlu0 %v1276, 110
    %v1320 = vpop.permute.xlu0 %1319
    %1321 = vrot.lane.b32.xlu0 %v1277, 110
    %v1322 = vpop.permute.xlu0 %1321
    %1323 = vrot.lane.b32.xlu0 %v1278, 110
    %v1324 = vpop.permute.xlu0 %1323
    %1325 = vrot.lane.b32.xlu0 %v1279, 110
    %v1326 = vpop.permute.xlu0 %1325
    %1327 = vrot.lane.b32.xlu0 %v1280, 110
    %v1328 = vpop.permute.xlu0 %1327
    %1329 = vrot.lane.b32.xlu0 %v1281, 110
    %v1330 = vpop.permute.xlu0 %1329
    %1331 = vrot.lane.b32.xlu0 %v1282, 110
    %v1332 = vpop.permute.xlu0 %1331
    %1333 = vrot.lane.b32.xlu0 %v1283, 110
    %v1334 = vpop.permute.xlu0 %1333
    %1335 = vrot.lane.b32.xlu0 %v1284, 110
    %v1336 = vpop.permute.xlu0 %1335
    %1337 = vrot.lane.b32.xlu0 %v1285, 110
    %v1338 = vpop.permute.xlu0 %1337
    %1339 = vrot.lane.b32.xlu0 %v1286, 110
    %v1340 = vpop.permute.xlu0 %1339
    %1341 = vrot.lane.b32.xlu0 %v1287, 110
    %v1342 = vpop.permute.xlu0 %1341
    %1343 = vrot.lane.b32.xlu0 %v1288, 110
    %v1344 = vpop.permute.xlu0 %1343
    %1345 = vrot.lane.b32.xlu0 %v1289, 110
    %v1346 = vpop.permute.xlu0 %1345
    %1347 = vrot.lane.b32.xlu0 %v1290, 110
    %v1348 = vpop.permute.xlu0 %1347
    %1349 = vrot.lane.b32.xlu0 %v1291, 110
    %v1350 = vpop.permute.xlu0 %1349
    %1351 = vrot.lane.b32.xlu0 %v1292, 110
    %v1352 = vpop.permute.xlu0 %1351
    %vm1353 = vcmask 900096
    %v1354 = vsel %vm1353, %v1314, %v1316
    %v1355 = vsel %vm1353, %v1316, %v1318
    %v1356 = vsel %vm1353, %v1318, %v1320
    %v1357 = vsel %vm1353, %v1320, %v1322
    %v1358 = vsel %vm1353, %v1324, %v1326
    %v1359 = vsel %vm1353, %v1326, %v1328
    %v1360 = vsel %vm1353, %v1328, %v1330
    %v1361 = vsel %vm1353, %v1330, %v1332
    %v1362 = vsel %vm1353, %v1334, %v1336
    %v1363 = vsel %vm1353, %v1336, %v1338
    %v1364 = vsel %vm1353, %v1338, %v1340
    %v1365 = vsel %vm1353, %v1340, %v1342
    %v1366 = vsel %vm1353, %v1344, %v1346
    %v1367 = vsel %vm1353, %v1346, %v1348
    %v1368 = vsel %vm1353, %v1348, %v1350
    %v1369 = vsel %vm1353, %v1350, %v1352
    %v1390 = vadd.f32 %v1161, %v1314
    %v1391 = vadd.f32 %v1162, %v1354
    %v1392 = vadd.f32 %v1163, %v1355
    %v1393 = vadd.f32 %v1164, %v1356
    %v1394 = vadd.f32 %v1165, %v1357
    %v1395 = vadd.f32 %v1166, %v1324
    %v1396 = vadd.f32 %v1167, %v1358
    %v1397 = vadd.f32 %v1168, %v1359
    %v1398 = vadd.f32 %v1169, %v1360
    %v1399 = vadd.f32 %v1170, %v1361
    %v1400 = vadd.f32 %v1171, %v1334
    %v1401 = vadd.f32 %v1172, %v1362
    %v1402 = vadd.f32 %v1173, %v1363
    %v1403 = vadd.f32 %v1174, %v1364
    %v1404 = vadd.f32 %v1175, %v1365
    %v1405 = vadd.f32 %v1176, %v1344
    %v1406 = vadd.f32 %v1177, %v1366
    %v1407 = vadd.f32 %v1178, %v1367
    %v1408 = vadd.f32 %v1179, %v1368
    %v1409 = vadd.f32 %v1180, %v1369
    %1410 = vset.pattern.permute.xlu0 6
    %1411 = vperm.xlu0 %1410, %v285
    %v1412 = vpop.permute.xlu0 %1411
    %1414 = vset.pattern.permute.xlu0 6
    %1415 = vperm.xlu0 %1414, %v286
    %v1416 = vpop.permute.xlu0 %1415
    %1418 = vset.pattern.permute.xlu0 6
    %1419 = vperm.xlu0 %1418, %v287
    %v1420 = vpop.permute.xlu0 %1419
    %1422 = vset.pattern.permute.xlu0 6
    %1423 = vperm.xlu0 %1422, %v288
    %v1424 = vpop.permute.xlu0 %1423
    %v1426 = vmul.f32 %v1181, %v1412
    %v1427 = vmul.f32 %v1182, %v1412
    %v1428 = vmul.f32 %v1183, %v1412
    %v1429 = vmul.f32 %v1184, %v1412
    %v1430 = vmul.f32 %v1185, %v1412
    %v1431 = vmul.f32 %v1186, %v1416
    %v1432 = vmul.f32 %v1187, %v1416
    %v1433 = vmul.f32 %v1188, %v1416
    %v1434 = vmul.f32 %v1189, %v1416
    %v1435 = vmul.f32 %v1190, %v1416
    %v1436 = vmul.f32 %v1191, %v1420
    %v1437 = vmul.f32 %v1192, %v1420
    %v1438 = vmul.f32 %v1193, %v1420
    %v1439 = vmul.f32 %v1194, %v1420
    %v1440 = vmul.f32 %v1195, %v1420
    %v1441 = vmul.f32 %v1196, %v1424
    %v1442 = vmul.f32 %v1197, %v1424
    %v1443 = vmul.f32 %v1198, %v1424
    %v1444 = vmul.f32 %v1199, %v1424
    %v1445 = vmul.f32 %v1200, %v1424
    %s1446 = scalar_lea.vmem %s4, 6
    %v1447 = vld [vmem:[%s1446] ss:$8 sm:$0xf]
    %v1449 = vlaneseq
    %v1450 = vshrl.u32 %v1449, 7
    %v1451 = vsub.s32 0, %v1450
    %v1452 = vrot.slane %v1447, %v1451
    %v1453 = vlaneseq
    %v1454 = vshrl.u32 %v1453, 7
    %v1455 = vsub.s32 1, %v1454
    %v1456 = vrot.slane %v1447, %v1455
    %v1457 = vlaneseq
    %v1458 = vshrl.u32 %v1457, 7
    %v1459 = vsub.s32 2, %v1458
    %v1460 = vrot.slane %v1447, %v1459
    %v1461 = vlaneseq
    %v1462 = vshrl.u32 %v1461, 7
    %v1463 = vsub.s32 3, %v1462
    %v1464 = vrot.slane %v1447, %v1463
    %1465 = vrot.lane.b32.xlu0 %v1452, 15
    %v1466 = vpop.permute.xlu0 %1465
    %1467 = vrot.lane.b32.xlu0 %v1456, 15
    %v1468 = vpop.permute.xlu0 %1467
    %1469 = vrot.lane.b32.xlu0 %v1460, 15
    %v1470 = vpop.permute.xlu0 %1469
    %1471 = vrot.lane.b32.xlu0 %v1464, 15
    %v1472 = vpop.permute.xlu0 %1471
    %vm1473 = vcmask 121856
    %v1474 = vsel %vm1473, %v1466, %v1468
    %v1475 = vsel %vm1473, %v1468, %v1470
    %v1476 = vsel %vm1473, %v1470, %v1472
    %v1482 = vmul.f32 %v1426, %v1466
    %v1483 = vmul.f32 %v1427, %v1474
    %v1484 = vmul.f32 %v1428, %v1475
    %v1485 = vmul.f32 %v1429, %v1476
    %v1486 = vmul.f32 %v1430, %v1472
    %v1487 = vmul.f32 %v1431, %v1466
    %v1488 = vmul.f32 %v1432, %v1474
    %v1489 = vmul.f32 %v1433, %v1475
    %v1490 = vmul.f32 %v1434, %v1476
    %v1491 = vmul.f32 %v1435, %v1472
    %v1492 = vmul.f32 %v1436, %v1466
    %v1493 = vmul.f32 %v1437, %v1474
    %v1494 = vmul.f32 %v1438, %v1475
    %v1495 = vmul.f32 %v1439, %v1476
    %v1496 = vmul.f32 %v1440, %v1472
    %v1497 = vmul.f32 %v1441, %v1466
    %v1498 = vmul.f32 %v1442, %v1474
    %v1499 = vmul.f32 %v1443, %v1475
    %v1500 = vmul.f32 %v1444, %v1476
    %v1501 = vmul.f32 %v1445, %v1472
    %1522 = vrot.lane.b32.xlu0 %v1482, 96
    %v1523 = vpop.permute.xlu0 %1522
    %1524 = vrot.lane.b32.xlu0 %v1483, 96
    %v1525 = vpop.permute.xlu0 %1524
    %1526 = vrot.lane.b32.xlu0 %v1484, 96
    %v1527 = vpop.permute.xlu0 %1526
    %1528 = vrot.lane.b32.xlu0 %v1485, 96
    %v1529 = vpop.permute.xlu0 %1528
    %1530 = vrot.lane.b32.xlu0 %v1486, 96
    %v1531 = vpop.permute.xlu0 %1530
    %1532 = vrot.lane.b32.xlu0 %v1487, 96
    %v1533 = vpop.permute.xlu0 %1532
    %1534 = vrot.lane.b32.xlu0 %v1488, 96
    %v1535 = vpop.permute.xlu0 %1534
    %1536 = vrot.lane.b32.xlu0 %v1489, 96
    %v1537 = vpop.permute.xlu0 %1536
    %1538 = vrot.lane.b32.xlu0 %v1490, 96
    %v1539 = vpop.permute.xlu0 %1538
    %1540 = vrot.lane.b32.xlu0 %v1491, 96
    %v1541 = vpop.permute.xlu0 %1540
    %1542 = vrot.lane.b32.xlu0 %v1492, 96
    %v1543 = vpop.permute.xlu0 %1542
    %1544 = vrot.lane.b32.xlu0 %v1493, 96
    %v1545 = vpop.permute.xlu0 %1544
    %1546 = vrot.lane.b32.xlu0 %v1494, 96
    %v1547 = vpop.permute.xlu0 %1546
    %1548 = vrot.lane.b32.xlu0 %v1495, 96
    %v1549 = vpop.permute.xlu0 %1548
    %1550 = vrot.lane.b32.xlu0 %v1496, 96
    %v1551 = vpop.permute.xlu0 %1550
    %1552 = vrot.lane.b32.xlu0 %v1497, 96
    %v1553 = vpop.permute.xlu0 %1552
    %1554 = vrot.lane.b32.xlu0 %v1498, 96
    %v1555 = vpop.permute.xlu0 %1554
    %1556 = vrot.lane.b32.xlu0 %v1499, 96
    %v1557 = vpop.permute.xlu0 %1556
    %1558 = vrot.lane.b32.xlu0 %v1500, 96
    %v1559 = vpop.permute.xlu0 %1558
    %1560 = vrot.lane.b32.xlu0 %v1501, 96
    %v1561 = vpop.permute.xlu0 %1560
    %vm1562 = vcmask 785408
    %v1563 = vsel %vm1562, %v1523, %v1525
    %v1564 = vsel %vm1562, %v1525, %v1527
    %v1565 = vsel %vm1562, %v1527, %v1529
    %v1566 = vsel %vm1562, %v1529, %v1531
    %v1567 = vsel %vm1562, %v1533, %v1535
    %v1568 = vsel %vm1562, %v1535, %v1537
    %v1569 = vsel %vm1562, %v1537, %v1539
    %v1570 = vsel %vm1562, %v1539, %v1541
    %v1571 = vsel %vm1562, %v1543, %v1545
    %v1572 = vsel %vm1562, %v1545, %v1547
    %v1573 = vsel %vm1562, %v1547, %v1549
    %v1574 = vsel %vm1562, %v1549, %v1551
    %v1575 = vsel %vm1562, %v1553, %v1555
    %v1576 = vsel %vm1562, %v1555, %v1557
    %v1577 = vsel %vm1562, %v1557, %v1559
    %v1578 = vsel %vm1562, %v1559, %v1561
    %v1599 = vadd.f32 %v1390, %v1523
    %v1600 = vadd.f32 %v1391, %v1563
    %v1601 = vadd.f32 %v1392, %v1564
    %v1602 = vadd.f32 %v1393, %v1565
    %v1603 = vadd.f32 %v1394, %v1566
    %v1604 = vadd.f32 %v1395, %v1533
    %v1605 = vadd.f32 %v1396, %v1567
    %v1606 = vadd.f32 %v1397, %v1568
    %v1607 = vadd.f32 %v1398, %v1569
    %v1608 = vadd.f32 %v1399, %v1570
    %v1609 = vadd.f32 %v1400, %v1543
    %v1610 = vadd.f32 %v1401, %v1571
    %v1611 = vadd.f32 %v1402, %v1572
    %v1612 = vadd.f32 %v1403, %v1573
    %v1613 = vadd.f32 %v1404, %v1574
    %v1614 = vadd.f32 %v1405, %v1553
    %v1615 = vadd.f32 %v1406, %v1575
    %v1616 = vadd.f32 %v1407, %v1576
    %v1617 = vadd.f32 %v1408, %v1577
    %v1618 = vadd.f32 %v1409, %v1578
    %1619 = vset.pattern.permute.xlu0 7
    %1620 = vperm.xlu0 %1619, %v285
    %v1621 = vpop.permute.xlu0 %1620
    %1623 = vset.pattern.permute.xlu0 7
    %1624 = vperm.xlu0 %1623, %v286
    %v1625 = vpop.permute.xlu0 %1624
    %1627 = vset.pattern.permute.xlu0 7
    %1628 = vperm.xlu0 %1627, %v287
    %v1629 = vpop.permute.xlu0 %1628
    %1631 = vset.pattern.permute.xlu0 7
    %1632 = vperm.xlu0 %1631, %v288
    %v1633 = vpop.permute.xlu0 %1632
    %v1635 = vmul.f32 %v1181, %v1621
    %v1636 = vmul.f32 %v1182, %v1621
    %v1637 = vmul.f32 %v1183, %v1621
    %v1638 = vmul.f32 %v1184, %v1621
    %v1639 = vmul.f32 %v1185, %v1621
    %v1640 = vmul.f32 %v1186, %v1625
    %v1641 = vmul.f32 %v1187, %v1625
    %v1642 = vmul.f32 %v1188, %v1625
    %v1643 = vmul.f32 %v1189, %v1625
    %v1644 = vmul.f32 %v1190, %v1625
    %v1645 = vmul.f32 %v1191, %v1629
    %v1646 = vmul.f32 %v1192, %v1629
    %v1647 = vmul.f32 %v1193, %v1629
    %v1648 = vmul.f32 %v1194, %v1629
    %v1649 = vmul.f32 %v1195, %v1629
    %v1650 = vmul.f32 %v1196, %v1633
    %v1651 = vmul.f32 %v1197, %v1633
    %v1652 = vmul.f32 %v1198, %v1633
    %v1653 = vmul.f32 %v1199, %v1633
    %v1654 = vmul.f32 %v1200, %v1633
    %s1655 = scalar_lea.vmem %s4, 7
    %v1656 = vld [vmem:[%s1655] ss:$8 sm:$0xf]
    %v1658 = vlaneseq
    %v1659 = vshrl.u32 %v1658, 7
    %v1660 = vsub.s32 0, %v1659
    %v1661 = vrot.slane %v1656, %v1660
    %v1662 = vlaneseq
    %v1663 = vshrl.u32 %v1662, 7
    %v1664 = vsub.s32 1, %v1663
    %v1665 = vrot.slane %v1656, %v1664
    %v1666 = vlaneseq
    %v1667 = vshrl.u32 %v1666, 7
    %v1668 = vsub.s32 2, %v1667
    %v1669 = vrot.slane %v1656, %v1668
    %v1670 = vlaneseq
    %v1671 = vshrl.u32 %v1670, 7
    %v1672 = vsub.s32 3, %v1671
    %v1673 = vrot.slane %v1656, %v1672
    %1674 = vrot.lane.b32.xlu0 %v1661, 16
    %v1675 = vpop.permute.xlu0 %1674
    %1676 = vrot.lane.b32.xlu0 %v1665, 16
    %v1677 = vpop.permute.xlu0 %1676
    %1678 = vrot.lane.b32.xlu0 %v1669, 16
    %v1679 = vpop.permute.xlu0 %1678
    %1680 = vrot.lane.b32.xlu0 %v1673, 16
    %v1681 = vpop.permute.xlu0 %1680
    %vm1682 = vcmask 130048
    %v1683 = vsel %vm1682, %v1675, %v1677
    %v1684 = vsel %vm1682, %v1677, %v1679
    %v1685 = vsel %vm1682, %v1679, %v1681
    %v1691 = vmul.f32 %v1635, %v1675
    %v1692 = vmul.f32 %v1636, %v1683
    %v1693 = vmul.f32 %v1637, %v1684
    %v1694 = vmul.f32 %v1638, %v1685
    %v1695 = vmul.f32 %v1639, %v1681
    %v1696 = vmul.f32 %v1640, %v1675
    %v1697 = vmul.f32 %v1641, %v1683
    %v1698 = vmul.f32 %v1642, %v1684
    %v1699 = vmul.f32 %v1643, %v1685
    %v1700 = vmul.f32 %v1644, %v1681
    %v1701 = vmul.f32 %v1645, %v1675
    %v1702 = vmul.f32 %v1646, %v1683
    %v1703 = vmul.f32 %v1647, %v1684
    %v1704 = vmul.f32 %v1648, %v1685
    %v1705 = vmul.f32 %v1649, %v1681
    %v1706 = vmul.f32 %v1650, %v1675
    %v1707 = vmul.f32 %v1651, %v1683
    %v1708 = vmul.f32 %v1652, %v1684
    %v1709 = vmul.f32 %v1653, %v1685
    %v1710 = vmul.f32 %v1654, %v1681
    %1731 = vrot.lane.b32.xlu0 %v1691, 95
    %v1732 = vpop.permute.xlu0 %1731
    %1733 = vrot.lane.b32.xlu0 %v1692, 95
    %v1734 = vpop.permute.xlu0 %1733
    %1735 = vrot.lane.b32.xlu0 %v1693, 95
    %v1736 = vpop.permute.xlu0 %1735
    %1737 = vrot.lane.b32.xlu0 %v1694, 95
    %v1738 = vpop.permute.xlu0 %1737
    %1739 = vrot.lane.b32.xlu0 %v1695, 95
    %v1740 = vpop.permute.xlu0 %1739
    %1741 = vrot.lane.b32.xlu0 %v1696, 95
    %v1742 = vpop.permute.xlu0 %1741
    %1743 = vrot.lane.b32.xlu0 %v1697, 95
    %v1744 = vpop.permute.xlu0 %1743
    %1745 = vrot.lane.b32.xlu0 %v1698, 95
    %v1746 = vpop.permute.xlu0 %1745
    %1747 = vrot.lane.b32.xlu0 %v1699, 95
    %v1748 = vpop.permute.xlu0 %1747
    %1749 = vrot.lane.b32.xlu0 %v1700, 95
    %v1750 = vpop.permute.xlu0 %1749
    %1751 = vrot.lane.b32.xlu0 %v1701, 95
    %v1752 = vpop.permute.xlu0 %1751
    %1753 = vrot.lane.b32.xlu0 %v1702, 95
    %v1754 = vpop.permute.xlu0 %1753
    %1755 = vrot.lane.b32.xlu0 %v1703, 95
    %v1756 = vpop.permute.xlu0 %1755
    %1757 = vrot.lane.b32.xlu0 %v1704, 95
    %v1758 = vpop.permute.xlu0 %1757
    %1759 = vrot.lane.b32.xlu0 %v1705, 95
    %v1760 = vpop.permute.xlu0 %1759
    %1761 = vrot.lane.b32.xlu0 %v1706, 95
    %v1762 = vpop.permute.xlu0 %1761
    %1763 = vrot.lane.b32.xlu0 %v1707, 95
    %v1764 = vpop.permute.xlu0 %1763
    %1765 = vrot.lane.b32.xlu0 %v1708, 95
    %v1766 = vpop.permute.xlu0 %1765
    %1767 = vrot.lane.b32.xlu0 %v1709, 95
    %v1768 = vpop.permute.xlu0 %1767
    %1769 = vrot.lane.b32.xlu0 %v1710, 95
    %v1770 = vpop.permute.xlu0 %1769
    %vm1771 = vcmask 777216
    %v1772 = vsel %vm1771, %v1732, %v1734
    %v1773 = vsel %vm1771, %v1734, %v1736
    %v1774 = vsel %vm1771, %v1736, %v1738
    %v1775 = vsel %vm1771, %v1738, %v1740
    %v1776 = vsel %vm1771, %v1742, %v1744
    %v1777 = vsel %vm1771, %v1744, %v1746
    %v1778 = vsel %vm1771, %v1746, %v1748
    %v1779 = vsel %vm1771, %v1748, %v1750
    %v1780 = vsel %vm1771, %v1752, %v1754
    %v1781 = vsel %vm1771, %v1754, %v1756
    %v1782 = vsel %vm1771, %v1756, %v1758
    %v1783 = vsel %vm1771, %v1758, %v1760
    %v1784 = vsel %vm1771, %v1762, %v1764
    %v1785 = vsel %vm1771, %v1764, %v1766
    %v1786 = vsel %vm1771, %v1766, %v1768
    %v1787 = vsel %vm1771, %v1768, %v1770
    %v1808 = vadd.f32 %v1599, %v1732
    %v1809 = vadd.f32 %v1600, %v1772
    %v1810 = vadd.f32 %v1601, %v1773
    %v1811 = vadd.f32 %v1602, %v1774
    %v1812 = vadd.f32 %v1603, %v1775
    %v1813 = vadd.f32 %v1604, %v1742
    %v1814 = vadd.f32 %v1605, %v1776
    %v1815 = vadd.f32 %v1606, %v1777
    %v1816 = vadd.f32 %v1607, %v1778
    %v1817 = vadd.f32 %v1608, %v1779
    %v1818 = vadd.f32 %v1609, %v1752
    %v1819 = vadd.f32 %v1610, %v1780
    %v1820 = vadd.f32 %v1611, %v1781
    %v1821 = vadd.f32 %v1612, %v1782
    %v1822 = vadd.f32 %v1613, %v1783
    %v1823 = vadd.f32 %v1614, %v1762
    %v1824 = vadd.f32 %v1615, %v1784
    %v1825 = vadd.f32 %v1616, %v1785
    %v1826 = vadd.f32 %v1617, %v1786
    %v1827 = vadd.f32 %v1618, %v1787
    %1828 = vset.pattern.permute.xlu0 8
    %1829 = vperm.xlu0 %1828, %v285
    %v1830 = vpop.permute.xlu0 %1829
    %1832 = vset.pattern.permute.xlu0 8
    %1833 = vperm.xlu0 %1832, %v286
    %v1834 = vpop.permute.xlu0 %1833
    %1836 = vset.pattern.permute.xlu0 8
    %1837 = vperm.xlu0 %1836, %v287
    %v1838 = vpop.permute.xlu0 %1837
    %1840 = vset.pattern.permute.xlu0 8
    %1841 = vperm.xlu0 %1840, %v288
    %v1842 = vpop.permute.xlu0 %1841
    %v1844 = vmul.f32 %v1181, %v1830
    %v1845 = vmul.f32 %v1182, %v1830
    %v1846 = vmul.f32 %v1183, %v1830
    %v1847 = vmul.f32 %v1184, %v1830
    %v1848 = vmul.f32 %v1185, %v1830
    %v1849 = vmul.f32 %v1186, %v1834
    %v1850 = vmul.f32 %v1187, %v1834
    %v1851 = vmul.f32 %v1188, %v1834
    %v1852 = vmul.f32 %v1189, %v1834
    %v1853 = vmul.f32 %v1190, %v1834
    %v1854 = vmul.f32 %v1191, %v1838
    %v1855 = vmul.f32 %v1192, %v1838
    %v1856 = vmul.f32 %v1193, %v1838
    %v1857 = vmul.f32 %v1194, %v1838
    %v1858 = vmul.f32 %v1195, %v1838
    %v1859 = vmul.f32 %v1196, %v1842
    %v1860 = vmul.f32 %v1197, %v1842
    %v1861 = vmul.f32 %v1198, %v1842
    %v1862 = vmul.f32 %v1199, %v1842
    %v1863 = vmul.f32 %v1200, %v1842
    %s1864 = scalar_lea.vmem %s4, 32
    %v1865 = vld [vmem:[%s1864] ss:$8 sm:$0xf]
    %v1867 = vlaneseq
    %v1868 = vshrl.u32 %v1867, 7
    %v1869 = vsub.s32 0, %v1868
    %v1870 = vrot.slane %v1865, %v1869
    %v1871 = vlaneseq
    %v1872 = vshrl.u32 %v1871, 7
    %v1873 = vsub.s32 1, %v1872
    %v1874 = vrot.slane %v1865, %v1873
    %v1875 = vlaneseq
    %v1876 = vshrl.u32 %v1875, 7
    %v1877 = vsub.s32 2, %v1876
    %v1878 = vrot.slane %v1865, %v1877
    %v1879 = vlaneseq
    %v1880 = vshrl.u32 %v1879, 7
    %v1881 = vsub.s32 3, %v1880
    %v1882 = vrot.slane %v1865, %v1881
    %1883 = vrot.lane.b32.xlu0 %v1870, 17
    %v1884 = vpop.permute.xlu0 %1883
    %1885 = vrot.lane.b32.xlu0 %v1874, 17
    %v1886 = vpop.permute.xlu0 %1885
    %1887 = vrot.lane.b32.xlu0 %v1878, 17
    %v1888 = vpop.permute.xlu0 %1887
    %1889 = vrot.lane.b32.xlu0 %v1882, 17
    %v1890 = vpop.permute.xlu0 %1889
    %vm1891 = vcmask 138240
    %v1892 = vsel %vm1891, %v1884, %v1886
    %v1893 = vsel %vm1891, %v1886, %v1888
    %v1894 = vsel %vm1891, %v1888, %v1890
    %v1900 = vmul.f32 %v1844, %v1884
    %v1901 = vmul.f32 %v1845, %v1892
    %v1902 = vmul.f32 %v1846, %v1893
    %v1903 = vmul.f32 %v1847, %v1894
    %v1904 = vmul.f32 %v1848, %v1890
    %v1905 = vmul.f32 %v1849, %v1884
    %v1906 = vmul.f32 %v1850, %v1892
    %v1907 = vmul.f32 %v1851, %v1893
    %v1908 = vmul.f32 %v1852, %v1894
    %v1909 = vmul.f32 %v1853, %v1890
    %v1910 = vmul.f32 %v1854, %v1884
    %v1911 = vmul.f32 %v1855, %v1892
    %v1912 = vmul.f32 %v1856, %v1893
    %v1913 = vmul.f32 %v1857, %v1894
    %v1914 = vmul.f32 %v1858, %v1890
    %v1915 = vmul.f32 %v1859, %v1884
    %v1916 = vmul.f32 %v1860, %v1892
    %v1917 = vmul.f32 %v1861, %v1893
    %v1918 = vmul.f32 %v1862, %v1894
    %v1919 = vmul.f32 %v1863, %v1890
    %1940 = vrot.lane.b32.xlu0 %v1900, 94
    %v1941 = vpop.permute.xlu0 %1940
    %1942 = vrot.lane.b32.xlu0 %v1901, 94
    %v1943 = vpop.permute.xlu0 %1942
    %1944 = vrot.lane.b32.xlu0 %v1902, 94
    %v1945 = vpop.permute.xlu0 %1944
    %1946 = vrot.lane.b32.xlu0 %v1903, 94
    %v1947 = vpop.permute.xlu0 %1946
    %1948 = vrot.lane.b32.xlu0 %v1904, 94
    %v1949 = vpop.permute.xlu0 %1948
    %1950 = vrot.lane.b32.xlu0 %v1905, 94
    %v1951 = vpop.permute.xlu0 %1950
    %1952 = vrot.lane.b32.xlu0 %v1906, 94
    %v1953 = vpop.permute.xlu0 %1952
    %1954 = vrot.lane.b32.xlu0 %v1907, 94
    %v1955 = vpop.permute.xlu0 %1954
    %1956 = vrot.lane.b32.xlu0 %v1908, 94
    %v1957 = vpop.permute.xlu0 %1956
    %1958 = vrot.lane.b32.xlu0 %v1909, 94
    %v1959 = vpop.permute.xlu0 %1958
    %1960 = vrot.lane.b32.xlu0 %v1910, 94
    %v1961 = vpop.permute.xlu0 %1960
    %1962 = vrot.lane.b32.xlu0 %v1911, 94
    %v1963 = vpop.permute.xlu0 %1962
    %1964 = vrot.lane.b32.xlu0 %v1912, 94
    %v1965 = vpop.permute.xlu0 %1964
    %1966 = vrot.lane.b32.xlu0 %v1913, 94
    %v1967 = vpop.permute.xlu0 %1966
    %1968 = vrot.lane.b32.xlu0 %v1914, 94
    %v1969 = vpop.permute.xlu0 %1968
    %1970 = vrot.lane.b32.xlu0 %v1915, 94
    %v1971 = vpop.permute.xlu0 %1970
    %1972 = vrot.lane.b32.xlu0 %v1916, 94
    %v1973 = vpop.permute.xlu0 %1972
    %1974 = vrot.lane.b32.xlu0 %v1917, 94
    %v1975 = vpop.permute.xlu0 %1974
    %1976 = vrot.lane.b32.xlu0 %v1918, 94
    %v1977 = vpop.permute.xlu0 %1976
    %1978 = vrot.lane.b32.xlu0 %v1919, 94
    %v1979 = vpop.permute.xlu0 %1978
    %vm1980 = vcmask 769024
    %v1981 = vsel %vm1980, %v1941, %v1943
    %v1982 = vsel %vm1980, %v1943, %v1945
    %v1983 = vsel %vm1980, %v1945, %v1947
    %v1984 = vsel %vm1980, %v1947, %v1949
    %v1985 = vsel %vm1980, %v1951, %v1953
    %v1986 = vsel %vm1980, %v1953, %v1955
    %v1987 = vsel %vm1980, %v1955, %v1957
    %v1988 = vsel %vm1980, %v1957, %v1959
    %v1989 = vsel %vm1980, %v1961, %v1963
    %v1990 = vsel %vm1980, %v1963, %v1965
    %v1991 = vsel %vm1980, %v1965, %v1967
    %v1992 = vsel %vm1980, %v1967, %v1969
    %v1993 = vsel %vm1980, %v1971, %v1973
    %v1994 = vsel %vm1980, %v1973, %v1975
    %v1995 = vsel %vm1980, %v1975, %v1977
    %v1996 = vsel %vm1980, %v1977, %v1979
    %v2017 = vadd.f32 %v1808, %v1941
    %v2018 = vadd.f32 %v1809, %v1981
    %v2019 = vadd.f32 %v1810, %v1982
    %v2020 = vadd.f32 %v1811, %v1983
    %v2021 = vadd.f32 %v1812, %v1984
    %v2022 = vadd.f32 %v1813, %v1951
    %v2023 = vadd.f32 %v1814, %v1985
    %v2024 = vadd.f32 %v1815, %v1986
    %v2025 = vadd.f32 %v1816, %v1987
    %v2026 = vadd.f32 %v1817, %v1988
    %v2027 = vadd.f32 %v1818, %v1961
    %v2028 = vadd.f32 %v1819, %v1989
    %v2029 = vadd.f32 %v1820, %v1990
    %v2030 = vadd.f32 %v1821, %v1991
    %v2031 = vadd.f32 %v1822, %v1992
    %v2032 = vadd.f32 %v1823, %v1971
    %v2033 = vadd.f32 %v1824, %v1993
    %v2034 = vadd.f32 %v1825, %v1994
    %v2035 = vadd.f32 %v1826, %v1995
    %v2036 = vadd.f32 %v1827, %v1996
    %v2037 = vld [vmem:[%s5] sm:$0xff]
    %v2038 = vld [vmem:[%s5 + $0x8] sm:$0xff]
    %v2039 = vld [vmem:[%s5 + $0x10] sm:$0xff]
    %v2040 = vld [vmem:[%s5 + $0x18] sm:$0xff]
    %2042 = vset.pattern.permute.xlu0 0
    %2043 = vperm.xlu0 %2042, %v2037
    %v2044 = vpop.permute.xlu0 %2043
    %2047 = vset.pattern.permute.xlu0 0
    %2048 = vperm.xlu0 %2047, %v2038
    %v2049 = vpop.permute.xlu0 %2048
    %2052 = vset.pattern.permute.xlu0 0
    %2053 = vperm.xlu0 %2052, %v2039
    %v2054 = vpop.permute.xlu0 %2053
    %2057 = vset.pattern.permute.xlu0 0
    %2058 = vperm.xlu0 %2057, %v2040
    %v2059 = vpop.permute.xlu0 %2058
    %v2061 = vadd.f32 %v2017, %v2044
    %v2062 = vadd.f32 %v2018, %v2044
    %v2063 = vadd.f32 %v2019, %v2044
    %v2064 = vadd.f32 %v2020, %v2044
    %v2065 = vadd.f32 %v2021, %v2044
    %v2066 = vadd.f32 %v2022, %v2049
    %v2067 = vadd.f32 %v2023, %v2049
    %v2068 = vadd.f32 %v2024, %v2049
    %v2069 = vadd.f32 %v2025, %v2049
    %v2070 = vadd.f32 %v2026, %v2049
    %v2071 = vadd.f32 %v2027, %v2054
    %v2072 = vadd.f32 %v2028, %v2054
    %v2073 = vadd.f32 %v2029, %v2054
    %v2074 = vadd.f32 %v2030, %v2054
    %v2075 = vadd.f32 %v2031, %v2054
    %v2076 = vadd.f32 %v2032, %v2059
    %v2077 = vadd.f32 %v2033, %v2059
    %v2078 = vadd.f32 %v2034, %v2059
    %v2079 = vadd.f32 %v2035, %v2059
    %v2080 = vadd.f32 %v2036, %v2059
    %v2081 = vmul.f32 %v2061, 0.5
    %v2082 = vmul.f32 %v2062, 0.5
    %v2083 = vmul.f32 %v2063, 0.5
    %v2084 = vmul.f32 %v2064, 0.5
    %v2085 = vmul.f32 %v2065, 0.5
    %v2086 = vmul.f32 %v2066, 0.5
    %v2087 = vmul.f32 %v2067, 0.5
    %v2088 = vmul.f32 %v2068, 0.5
    %v2089 = vmul.f32 %v2069, 0.5
    %v2090 = vmul.f32 %v2070, 0.5
    %v2091 = vmul.f32 %v2061, 0.70710677
    %v2092 = vmul.f32 %v2062, 0.70710677
    %v2093 = vmul.f32 %v2063, 0.70710677
    %v2094 = vmul.f32 %v2064, 0.70710677
    %v2095 = vmul.f32 %v2065, 0.70710677
    %v2096 = vmul.f32 %v2066, 0.70710677
    %v2097 = vmul.f32 %v2067, 0.70710677
    %v2098 = vmul.f32 %v2068, 0.70710677
    %v2099 = vmul.f32 %v2069, 0.70710677
    %v2100 = vmul.f32 %v2070, 0.70710677
    %v2101 = vand.u32 2147483647, %v2091
    %v2102 = vand.u32 2147483647, %v2092
    %v2103 = vand.u32 2147483647, %v2093
    %v2104 = vand.u32 2147483647, %v2094
    %v2105 = vand.u32 2147483647, %v2095
    %v2106 = vand.u32 2147483647, %v2096
    %v2107 = vand.u32 2147483647, %v2097
    %v2108 = vand.u32 2147483647, %v2098
    %v2109 = vand.u32 2147483647, %v2099
    %v2110 = vand.u32 2147483647, %v2100
    %v2111 = vmul.f32 %v2101, 0.3275911
    %v2112 = vmul.f32 %v2102, 0.3275911
    %v2113 = vmul.f32 %v2103, 0.3275911
    %v2114 = vmul.f32 %v2104, 0.3275911
    %v2115 = vmul.f32 %v2105, 0.3275911
    %v2116 = vmul.f32 %v2106, 0.3275911
    %v2117 = vmul.f32 %v2107, 0.3275911
    %v2118 = vmul.f32 %v2108, 0.3275911
    %v2119 = vmul.f32 %v2109, 0.3275911
    %v2120 = vmul.f32 %v2110, 0.3275911
    %v2121 = vadd.f32 %v2111, 1.0
    %v2122 = vadd.f32 %v2112, 1.0
    %v2123 = vadd.f32 %v2113, 1.0
    %v2124 = vadd.f32 %v2114, 1.0
    %v2125 = vadd.f32 %v2115, 1.0
    %v2126 = vadd.f32 %v2116, 1.0
    %v2127 = vadd.f32 %v2117, 1.0
    %v2128 = vadd.f32 %v2118, 1.0
    %v2129 = vadd.f32 %v2119, 1.0
    %v2130 = vadd.f32 %v2120, 1.0
    %v2131 = vrcp.pop %v2121
    %v2132 = vmul.f32 1.0, %v2131
    %v2133 = vrcp.pop %v2122
    %v2134 = vmul.f32 1.0, %v2133
    %v2135 = vrcp.pop %v2123
    %v2136 = vmul.f32 1.0, %v2135
    %v2137 = vrcp.pop %v2124
    %v2138 = vmul.f32 1.0, %v2137
    %v2139 = vrcp.pop %v2125
    %v2140 = vmul.f32 1.0, %v2139
    %v2141 = vrcp.pop %v2126
    %v2142 = vmul.f32 1.0, %v2141
    %v2143 = vrcp.pop %v2127
    %v2144 = vmul.f32 1.0, %v2143
    %v2145 = vrcp.pop %v2128
    %v2146 = vmul.f32 1.0, %v2145
    %v2147 = vrcp.pop %v2129
    %v2148 = vmul.f32 1.0, %v2147
    %v2149 = vrcp.pop %v2130
    %v2150 = vmul.f32 1.0, %v2149
    %v2151 = vmul.f32 %v2132, 1.0614054
    %v2152 = vmul.f32 %v2134, 1.0614054
    %v2153 = vmul.f32 %v2136, 1.0614054
    %v2154 = vmul.f32 %v2138, 1.0614054
    %v2155 = vmul.f32 %v2140, 1.0614054
    %v2156 = vmul.f32 %v2142, 1.0614054
    %v2157 = vmul.f32 %v2144, 1.0614054
    %v2158 = vmul.f32 %v2146, 1.0614054
    %v2159 = vmul.f32 %v2148, 1.0614054
    %v2160 = vmul.f32 %v2150, 1.0614054
    %v2161 = vadd.f32 %v2151, -1.4531521
    %v2162 = vadd.f32 %v2152, -1.4531521
    %v2163 = vadd.f32 %v2153, -1.4531521
    %v2164 = vadd.f32 %v2154, -1.4531521
    %v2165 = vadd.f32 %v2155, -1.4531521
    %v2166 = vadd.f32 %v2156, -1.4531521
    %v2167 = vadd.f32 %v2157, -1.4531521
    %v2168 = vadd.f32 %v2158, -1.4531521
    %v2169 = vadd.f32 %v2159, -1.4531521
    %v2170 = vadd.f32 %v2160, -1.4531521
    %v2171 = vmul.f32 %v2161, %v2132
    %v2172 = vmul.f32 %v2162, %v2134
    %v2173 = vmul.f32 %v2163, %v2136
    %v2174 = vmul.f32 %v2164, %v2138
    %v2175 = vmul.f32 %v2165, %v2140
    %v2176 = vmul.f32 %v2166, %v2142
    %v2177 = vmul.f32 %v2167, %v2144
    %v2178 = vmul.f32 %v2168, %v2146
    %v2179 = vmul.f32 %v2169, %v2148
    %v2180 = vmul.f32 %v2170, %v2150
    %v2181 = vadd.f32 %v2171, 1.4214138
    %v2182 = vadd.f32 %v2172, 1.4214138
    %v2183 = vadd.f32 %v2173, 1.4214138
    %v2184 = vadd.f32 %v2174, 1.4214138
    %v2185 = vadd.f32 %v2175, 1.4214138
    %v2186 = vadd.f32 %v2176, 1.4214138
    %v2187 = vadd.f32 %v2177, 1.4214138
    %v2188 = vadd.f32 %v2178, 1.4214138
    %v2189 = vadd.f32 %v2179, 1.4214138
    %v2190 = vadd.f32 %v2180, 1.4214138
    %v2191 = vmul.f32 %v2181, %v2132
    %v2192 = vmul.f32 %v2182, %v2134
    %v2193 = vmul.f32 %v2183, %v2136
    %v2194 = vmul.f32 %v2184, %v2138
    %v2195 = vmul.f32 %v2185, %v2140
    %v2196 = vmul.f32 %v2186, %v2142
    %v2197 = vmul.f32 %v2187, %v2144
    %v2198 = vmul.f32 %v2188, %v2146
    %v2199 = vmul.f32 %v2189, %v2148
    %v2200 = vmul.f32 %v2190, %v2150
    %v2201 = vadd.f32 %v2191, -0.28449672
    %v2202 = vadd.f32 %v2192, -0.28449672
    %v2203 = vadd.f32 %v2193, -0.28449672
    %v2204 = vadd.f32 %v2194, -0.28449672
    %v2205 = vadd.f32 %v2195, -0.28449672
    %v2206 = vadd.f32 %v2196, -0.28449672
    %v2207 = vadd.f32 %v2197, -0.28449672
    %v2208 = vadd.f32 %v2198, -0.28449672
    %v2209 = vadd.f32 %v2199, -0.28449672
    %v2210 = vadd.f32 %v2200, -0.28449672
    %v2211 = vmul.f32 %v2201, %v2132
    %v2212 = vmul.f32 %v2202, %v2134
    %v2213 = vmul.f32 %v2203, %v2136
    %v2214 = vmul.f32 %v2204, %v2138
    %v2215 = vmul.f32 %v2205, %v2140
    %v2216 = vmul.f32 %v2206, %v2142
    %v2217 = vmul.f32 %v2207, %v2144
    %v2218 = vmul.f32 %v2208, %v2146
    %v2219 = vmul.f32 %v2209, %v2148
    %v2220 = vmul.f32 %v2210, %v2150
    %v2221 = vadd.f32 %v2211, 0.2548296
    %v2222 = vadd.f32 %v2212, 0.2548296
    %v2223 = vadd.f32 %v2213, 0.2548296
    %v2224 = vadd.f32 %v2214, 0.2548296
    %v2225 = vadd.f32 %v2215, 0.2548296
    %v2226 = vadd.f32 %v2216, 0.2548296
    %v2227 = vadd.f32 %v2217, 0.2548296
    %v2228 = vadd.f32 %v2218, 0.2548296
    %v2229 = vadd.f32 %v2219, 0.2548296
    %v2230 = vadd.f32 %v2220, 0.2548296
    %v2231 = vmul.f32 %v2221, %v2132
    %v2232 = vmul.f32 %v2222, %v2134
    %v2233 = vmul.f32 %v2223, %v2136
    %v2234 = vmul.f32 %v2224, %v2138
    %v2235 = vmul.f32 %v2225, %v2140
    %v2236 = vmul.f32 %v2226, %v2142
    %v2237 = vmul.f32 %v2227, %v2144
    %v2238 = vmul.f32 %v2228, %v2146
    %v2239 = vmul.f32 %v2229, %v2148
    %v2240 = vmul.f32 %v2230, %v2150
    %v2241 = vsub.f32 0.0, %v2101
    %v2242 = vsub.f32 0.0, %v2102
    %v2243 = vsub.f32 0.0, %v2103
    %v2244 = vsub.f32 0.0, %v2104
    %v2245 = vsub.f32 0.0, %v2105
    %v2246 = vsub.f32 0.0, %v2106
    %v2247 = vsub.f32 0.0, %v2107
    %v2248 = vsub.f32 0.0, %v2108
    %v2249 = vsub.f32 0.0, %v2109
    %v2250 = vsub.f32 0.0, %v2110
    %v2251 = vmul.f32 %v2241, %v2101
    %v2252 = vmul.f32 %v2242, %v2102
    %v2253 = vmul.f32 %v2243, %v2103
    %v2254 = vmul.f32 %v2244, %v2104
    %v2255 = vmul.f32 %v2245, %v2105
    %v2256 = vmul.f32 %v2246, %v2106
    %v2257 = vmul.f32 %v2247, %v2107
    %v2258 = vmul.f32 %v2248, %v2108
    %v2259 = vmul.f32 %v2249, %v2109
    %v2260 = vmul.f32 %v2250, %v2110
    %v2261 = vmul.f32 %v2251, 1.442695
    %v2262 = vpow.pop %v2261
    %v2263 = vmul.f32 %v2252, 1.442695
    %v2264 = vpow.pop %v2263
    %v2265 = vmul.f32 %v2253, 1.442695
    %v2266 = vpow.pop %v2265
    %v2267 = vmul.f32 %v2254, 1.442695
    %v2268 = vpow.pop %v2267
    %v2269 = vmul.f32 %v2255, 1.442695
    %v2270 = vpow.pop %v2269
    %v2271 = vmul.f32 %v2256, 1.442695
    %v2272 = vpow.pop %v2271
    %v2273 = vmul.f32 %v2257, 1.442695
    %v2274 = vpow.pop %v2273
    %v2275 = vmul.f32 %v2258, 1.442695
    %v2276 = vpow.pop %v2275
    %v2277 = vmul.f32 %v2259, 1.442695
    %v2278 = vpow.pop %v2277
    %v2279 = vmul.f32 %v2260, 1.442695
    %v2280 = vpow.pop %v2279
    %v2281 = vmul.f32 %v2231, %v2262
    %v2282 = vmul.f32 %v2232, %v2264
    %v2283 = vmul.f32 %v2233, %v2266
    %v2284 = vmul.f32 %v2234, %v2268
    %v2285 = vmul.f32 %v2235, %v2270
    %v2286 = vmul.f32 %v2236, %v2272
    %v2287 = vmul.f32 %v2237, %v2274
    %v2288 = vmul.f32 %v2238, %v2276
    %v2289 = vmul.f32 %v2239, %v2278
    %v2290 = vmul.f32 %v2240, %v2280
    %v2291 = vsub.f32 1.0, %v2281
    %v2292 = vsub.f32 1.0, %v2282
    %v2293 = vsub.f32 1.0, %v2283
    %v2294 = vsub.f32 1.0, %v2284
    %v2295 = vsub.f32 1.0, %v2285
    %v2296 = vsub.f32 1.0, %v2286
    %v2297 = vsub.f32 1.0, %v2287
    %v2298 = vsub.f32 1.0, %v2288
    %v2299 = vsub.f32 1.0, %v2289
    %v2300 = vsub.f32 1.0, %v2290
    %vm2301 = vcmp.lt.f32.partialorder %v2091, 0.0
    %vm2302 = vcmp.lt.f32.partialorder %v2092, 0.0
    %vm2303 = vcmp.lt.f32.partialorder %v2093, 0.0
    %vm2304 = vcmp.lt.f32.partialorder %v2094, 0.0
    %vm2305 = vcmp.lt.f32.partialorder %v2095, 0.0
    %vm2306 = vcmp.lt.f32.partialorder %v2096, 0.0
    %vm2307 = vcmp.lt.f32.partialorder %v2097, 0.0
    %vm2308 = vcmp.lt.f32.partialorder %v2098, 0.0
    %vm2309 = vcmp.lt.f32.partialorder %v2099, 0.0
    %vm2310 = vcmp.lt.f32.partialorder %v2100, 0.0
    %v2311 = vsub.f32 0.0, %v2291
    %v2312 = vsub.f32 0.0, %v2292
    %v2313 = vsub.f32 0.0, %v2293
    %v2314 = vsub.f32 0.0, %v2294
    %v2315 = vsub.f32 0.0, %v2295
    %v2316 = vsub.f32 0.0, %v2296
    %v2317 = vsub.f32 0.0, %v2297
    %v2318 = vsub.f32 0.0, %v2298
    %v2319 = vsub.f32 0.0, %v2299
    %v2320 = vsub.f32 0.0, %v2300
    %v2321 = vsel %vm2301, %v2311, %v2291
    %v2322 = vsel %vm2302, %v2312, %v2292
    %v2323 = vsel %vm2303, %v2313, %v2293
    %v2324 = vsel %vm2304, %v2314, %v2294
    %v2325 = vsel %vm2305, %v2315, %v2295
    %v2326 = vsel %vm2306, %v2316, %v2296
    %v2327 = vsel %vm2307, %v2317, %v2297
    %v2328 = vsel %vm2308, %v2318, %v2298
    %v2329 = vsel %vm2309, %v2319, %v2299
    %v2330 = vsel %vm2310, %v2320, %v2300
    %v2331 = vadd.f32 %v2321, 1.0
    %v2332 = vadd.f32 %v2322, 1.0
    %v2333 = vadd.f32 %v2323, 1.0
    %v2334 = vadd.f32 %v2324, 1.0
    %v2335 = vadd.f32 %v2325, 1.0
    %v2336 = vadd.f32 %v2326, 1.0
    %v2337 = vadd.f32 %v2327, 1.0
    %v2338 = vadd.f32 %v2328, 1.0
    %v2339 = vadd.f32 %v2329, 1.0
    %v2340 = vadd.f32 %v2330, 1.0
    %v2341 = vmul.f32 %v2081, %v2331
    %v2342 = vmul.f32 %v2082, %v2332
    %v2343 = vmul.f32 %v2083, %v2333
    %v2344 = vmul.f32 %v2084, %v2334
    %v2345 = vmul.f32 %v2085, %v2335
    %v2346 = vmul.f32 %v2086, %v2336
    %v2347 = vmul.f32 %v2087, %v2337
    %v2348 = vmul.f32 %v2088, %v2338
    %v2349 = vmul.f32 %v2089, %v2339
    %v2350 = vmul.f32 %v2090, %v2340
    %v2351 = vmul.f32 %v2341, %v2071
    %v2352 = vmul.f32 %v2342, %v2072
    %v2353 = vmul.f32 %v2343, %v2073
    %v2354 = vmul.f32 %v2344, %v2074
    %v2355 = vmul.f32 %v2345, %v2075
    %v2356 = vmul.f32 %v2346, %v2076
    %v2357 = vmul.f32 %v2347, %v2077
    %v2358 = vmul.f32 %v2348, %v2078
    %v2359 = vmul.f32 %v2349, %v2079
    %v2360 = vmul.f32 %v2350, %v2080
    %v2361 = vld [vmem:[%s6] sm:$0xff]
    %v2362 = vld [vmem:[%s7] sm:$0xff]
    %2364 = vset.pattern.permute.xlu0 0
    %2365 = vperm.xlu0 %2364, %v2362
    %v2366 = vpop.permute.xlu0 %2365
    %2378 = vrot.lane.b32.xlu0 %v2351, 17
    %v2379 = vpop.permute.xlu0 %2378
    %2380 = vrot.lane.b32.xlu0 %v2352, 17
    %v2381 = vpop.permute.xlu0 %2380
    %2382 = vrot.lane.b32.xlu0 %v2353, 17
    %v2383 = vpop.permute.xlu0 %2382
    %2384 = vrot.lane.b32.xlu0 %v2354, 17
    %v2385 = vpop.permute.xlu0 %2384
    %2386 = vrot.lane.b32.xlu0 %v2355, 17
    %v2387 = vpop.permute.xlu0 %2386
    %2388 = vrot.lane.b32.xlu0 %v2356, 17
    %v2389 = vpop.permute.xlu0 %2388
    %2390 = vrot.lane.b32.xlu0 %v2357, 17
    %v2391 = vpop.permute.xlu0 %2390
    %2392 = vrot.lane.b32.xlu0 %v2358, 17
    %v2393 = vpop.permute.xlu0 %2392
    %2394 = vrot.lane.b32.xlu0 %v2359, 17
    %v2395 = vpop.permute.xlu0 %2394
    %2396 = vrot.lane.b32.xlu0 %v2360, 17
    %v2397 = vpop.permute.xlu0 %2396
    %v2398 = vsel %vm1891, %v2379, %v2381
    %v2399 = vsel %vm1891, %v2381, %v2383
    %v2400 = vsel %vm1891, %v2383, %v2385
    %v2401 = vsel %vm1891, %v2385, %v2387
    %v2402 = vsel %vm1891, %v2389, %v2391
    %v2403 = vsel %vm1891, %v2391, %v2393
    %v2404 = vsel %vm1891, %v2393, %v2395
    %v2405 = vsel %vm1891, %v2395, %v2397
    %v2415 = vsel %vm1682, %v2361, 0
    %2417 = vmatprep.subr.mxu0 0.0
    %2418 = vmatpush1.msra.mxu0 0.0
    %2419 = vmatprep.subr.mxu0 0.0
    %2420 = vmatpush1.msra.mxu0 0.0
    %2421 = vmatprep.subr.mxu0 0.0
    %2422 = vmatpush1.msra.mxu0 0.0
    %2423 = vmatprep.subr.mxu0 0.0
    %2424 = vmatpush1.msra.mxu0 0.0
    %2425 = vmatprep.subr.mxu0 0.0
    %2426 = vmatpush1.msra.mxu0 0.0
    %2427 = vmatprep.subr.mxu0 0.0
    %2428 = vmatpush1.msra.mxu0 0.0
    %2429 = vmatprep.subr.mxu0 0.0
    %2430 = vmatpush1.msra.mxu0 0.0
    %2431 = vmatprep.subr.mxu0 0.0
    %2432 = vmatpush1.msra.mxu0 0.0
    %2433 = vmatprep.subr.mxu0 0.0
    %2434 = vmatpush1.msra.mxu0 0.0
    %2435 = vmatprep.subr.mxu0 0.0
    %2436 = vmatpush1.msra.mxu0 0.0
    %2437 = vmatprep.subr.mxu0 0.0
    %2438 = vmatpush1.msra.mxu0 0.0
    %2439 = vmatprep.subr.mxu0 0.0
    %2440 = vmatpush1.msra.mxu0 0.0
    %2441 = vmatprep.subr.mxu0 0.0
    %2442 = vmatpush1.msra.mxu0 0.0
    %2443 = vmatprep.subr.mxu0 0.0
    %2444 = vmatpush1.msra.mxu0 0.0
    %2445 = vmatprep.subr.mxu0 %v2403
    %2446 = vmatpush1.msra.mxu0 %v2402
    %2447 = vmatprep.subr.mxu0 %v2399
    %2448 = vmatpush1.msra.mxu0 %v2398
    %2449 = vmatprep.subr.mxu0 0.0
    %2450 = vmatpush2.msra.mxu0 0.0
    %2451 = vmatprep.subr.mxu0 0.0
    %2452 = vmatpush2.msra.mxu0 0.0
    %2453 = vmatprep.subr.mxu0 0.0
    %2454 = vmatpush2.msra.mxu0 0.0
    %2455 = vmatprep.subr.mxu0 0.0
    %2456 = vmatpush2.msra.mxu0 0.0
    %2457 = vmatprep.subr.mxu0 0.0
    %2458 = vmatpush2.msra.mxu0 0.0
    %2459 = vmatprep.subr.mxu0 0.0
    %2460 = vmatpush2.msra.mxu0 0.0
    %2461 = vmatprep.subr.mxu0 0.0
    %2462 = vmatpush2.msra.mxu0 0.0
    %2463 = vmatprep.subr.mxu0 0.0
    %2464 = vmatpush2.msra.mxu0 0.0
    %2465 = vmatprep.subr.mxu0 0.0
    %2466 = vmatpush2.msra.mxu0 0.0
    %2467 = vmatprep.subr.mxu0 0.0
    %2468 = vmatpush2.msra.mxu0 0.0
    %2469 = vmatprep.subr.mxu0 0.0
    %2470 = vmatpush2.msra.mxu0 0.0
    %2471 = vmatprep.subr.mxu0 0.0
    %2472 = vmatpush2.msra.mxu0 0.0
    %2473 = vmatprep.subr.mxu0 0.0
    %2474 = vmatpush2.msra.mxu0 0.0
    %2475 = vmatprep.subr.mxu0 0.0
    %2476 = vmatpush2.msra.mxu0 0.0
    %2477 = vmatprep.subr.mxu0 0.0
    %2478 = vmatpush2.msra.mxu0 0.0
    %2479 = vmatprep.subr.mxu0 0.0
    %2480 = vmatpush2.msra.mxu0 0.0
    %2481 = vmatprep.mubr.f32.mxu0 0.0
    %2482 = vmatmul.mubr.f32.gmra.mxu0 %v2415
    %v2483 = vpop.f32.mrf.mxu0
    %v2484 = vadd.f32 %v2366, %v2483
    %v2485 = vpop.f32.mrf.mxu0
    %v2486 = vadd.f32 %v2366, %v2485
    %2487 = vdwg.mxu0
    %2488 = vmatprep.subr.mxu0 0.0
    %2489 = vmatpush1.msra.mxu0 0.0
    %2490 = vmatprep.subr.mxu0 0.0
    %2491 = vmatpush1.msra.mxu0 0.0
    %2492 = vmatprep.subr.mxu0 0.0
    %2493 = vmatpush1.msra.mxu0 0.0
    %2494 = vmatprep.subr.mxu0 0.0
    %2495 = vmatpush1.msra.mxu0 0.0
    %2496 = vmatprep.subr.mxu0 0.0
    %2497 = vmatpush1.msra.mxu0 0.0
    %2498 = vmatprep.subr.mxu0 0.0
    %2499 = vmatpush1.msra.mxu0 0.0
    %2500 = vmatprep.subr.mxu0 0.0
    %2501 = vmatpush1.msra.mxu0 0.0
    %2502 = vmatprep.subr.mxu0 0.0
    %2503 = vmatpush1.msra.mxu0 0.0
    %2504 = vmatprep.subr.mxu0 0.0
    %2505 = vmatpush1.msra.mxu0 0.0
    %2506 = vmatprep.subr.mxu0 0.0
    %2507 = vmatpush1.msra.mxu0 0.0
    %2508 = vmatprep.subr.mxu0 0.0
    %2509 = vmatpush1.msra.mxu0 0.0
    %2510 = vmatprep.subr.mxu0 0.0
    %2511 = vmatpush1.msra.mxu0 0.0
    %2512 = vmatprep.subr.mxu0 0.0
    %2513 = vmatpush1.msra.mxu0 0.0
    %2514 = vmatprep.subr.mxu0 0.0
    %2515 = vmatpush1.msra.mxu0 0.0
    %2516 = vmatprep.subr.mxu0 %v2405
    %2517 = vmatpush1.msra.mxu0 %v2404
    %2518 = vmatprep.subr.mxu0 %v2401
    %2519 = vmatpush1.msra.mxu0 %v2400
    %2520 = vmatprep.subr.mxu0 0.0
    %2521 = vmatpush2.msra.mxu0 0.0
    %2522 = vmatprep.subr.mxu0 0.0
    %2523 = vmatpush2.msra.mxu0 0.0
    %2524 = vmatprep.subr.mxu0 0.0
    %2525 = vmatpush2.msra.mxu0 0.0
    %2526 = vmatprep.subr.mxu0 0.0
    %2527 = vmatpush2.msra.mxu0 0.0
    %2528 = vmatprep.subr.mxu0 0.0
    %2529 = vmatpush2.msra.mxu0 0.0
    %2530 = vmatprep.subr.mxu0 0.0
    %2531 = vmatpush2.msra.mxu0 0.0
    %2532 = vmatprep.subr.mxu0 0.0
    %2533 = vmatpush2.msra.mxu0 0.0
    %2534 = vmatprep.subr.mxu0 0.0
    %2535 = vmatpush2.msra.mxu0 0.0
    %2536 = vmatprep.subr.mxu0 0.0
    %2537 = vmatpush2.msra.mxu0 0.0
    %2538 = vmatprep.subr.mxu0 0.0
    %2539 = vmatpush2.msra.mxu0 0.0
    %2540 = vmatprep.subr.mxu0 0.0
    %2541 = vmatpush2.msra.mxu0 0.0
    %2542 = vmatprep.subr.mxu0 0.0
    %2543 = vmatpush2.msra.mxu0 0.0
    %2544 = vmatprep.subr.mxu0 0.0
    %2545 = vmatpush2.msra.mxu0 0.0
    %2546 = vmatprep.subr.mxu0 0.0
    %2547 = vmatpush2.msra.mxu0 0.0
    %2548 = vmatprep.subr.mxu0 0.0
    %2549 = vmatpush2.msra.mxu0 0.0
    %2550 = vmatprep.subr.mxu0 0.0
    %2551 = vmatpush2.msra.mxu0 0.0
    %2552 = vmatprep.mubr.f32.mxu0 0.0
    %2553 = vmatmul.mubr.f32.gmra.mxu0 %v2415
    %v2554 = vpop.f32.mrf.mxu0
    %v2555 = vadd.f32 %v2366, %v2554
    %v2556 = vpop.f32.mrf.mxu0
    %v2557 = vadd.f32 %v2366, %v2556
    %2558 = vdwg.mxu0
    %2559 = vst [vmem:[#allocation3] sm:$0xff] %v2484
    %2560 = vst [vmem:[#allocation3 + $0x8] sm:$0xff] %v2486
    %2561 = vst [vmem:[#allocation3 + $0x10] sm:$0xff] %v2555
    %2562 = vst [vmem:[#allocation3 + $0x18] sm:$0xff] %v2557
    // Predicated region
    $region34: #{tpu_custom_call.1} parent=1 // pred_check
      _
    $region35: #{tpu_custom_call.1} parent=1 // pred_check_branch
      %2564 = sbr.rel (0) target = $region37
    $region36: #{tpu_custom_call.1} parent=1 // pred_region
      %s2566 = ssub.s32 512, 512
      %2567 = vsyncadd [#allocation4], %s2566
      %s2569 = sshll.u32 [#allocation3], 4
      %s2570 = int_to_ptr.vmem [resolvable:$true] %s2569
      %2572 = dma.vmem_to_hbm [thread:$0]  %s2570, 512, %s8, [#allocation4]
    $region37: #{tpu_custom_call.1} parent=1 // pred_fallthru
      _
    // Predicated region
    $region38: #{tpu_custom_call.1} parent=1 // pred_check
      _
    $region39: #{tpu_custom_call.1} parent=1 // pred_check_branch
      %2574 = sbr.rel (0) target = $region41
    $region40: #{tpu_custom_call.1} parent=1 // pred_region
      %2575 = dma.done [#allocation4], 512
    $region41: #{tpu_custom_call.1} parent=1 // pred_fallthru
      _
    %2576 = vsyncpa [#allocation4], 1

</llo_original>
